<compile_context>
chip_gen: v7x
topology: tpu7x:2x2x1
jax: 0.10.0
libtpu: 0.0.40
codegen_flags: <defaults>
</compile_context>

<pallas_src>
import math
import functools

import jax
import jax.numpy as jnp
from jax import lax
from jax.experimental import pallas as pl
from jax.experimental.pallas import tpu as pltpu

NUM_BUCKETS = 32
RELATIVE_MAX_DISTANCE = 128


def _round_up(x, m):
    return (x + m - 1) // m * m


def _vmem_limit_bytes():
    """Generation-aware scoped-VMEM cap: ~48 MiB on 64 MiB parts (v7x),
    ~112 MiB on 128 MiB parts (v5e/v6e).  Conservative fallback if the query
    is unavailable."""
    cap = None
    try:
        cap = getattr(pltpu.get_tpu_info(), "vmem_capacity_bytes", None)
    except Exception:
        cap = None
    if not cap:
        cap = 64 * 1024 * 1024
    return int(min(cap - 16 * 1024 * 1024, 112 * 1024 * 1024))


_VMEM_LIMIT = _vmem_limit_bytes()
_BIG_VMEM = _VMEM_LIMIT >= 80 * 1024 * 1024


def _pick_tile(dim, target, align):
    """Largest tile <= target that divides `dim` and is a multiple of `align`.
    Falls back to the full dim (always a legal BlockSpec block).
    TODO(synk): masked tail tiles for huge non-divisible T/S instead of the
    full-dim fallback."""
    if dim <= target:
        return dim
    t = (target // align) * align
    while t >= align:
        if dim % t == 0:
            return t
        t -= align
    return dim


# ------------------------------ tiled linear -------------------------------

def _linear_kernel(x_ref, w_ref, b_ref, o_ref, acc_ref):
    # o = x @ w^T + b, accumulated over the K grid axis (axis 2).
    @pl.when(pl.program_id(2) == 0)
    def _():
        acc_ref[...] = jnp.zeros_like(acc_ref)

    acc_ref[...] += lax.dot_general(
        x_ref[...], w_ref[...],
        (((1,), (1,)), ((), ())),       # contract K of x with K of w (w stays (N, K))
        preferred_element_type=jnp.float32)

    @pl.when(pl.program_id(2) == pl.num_programs(2) - 1)
    def _():
        o_ref[...] = (acc_ref[...] + b_ref[...]).astype(o_ref.dtype)


def pallas_linear(x, w, b, out_dtype=jnp.float32, *, tm=None, tn=None, tk=None):
    """F.linear: x (M, K), w (N, K), b (N,) -> (M, N).  bf16 operands hit the
    MXU's native path; accumulation is f32.  M (=B*T) is padded to the row tile
    so awkward row counts never produce an oversized unaligned block."""
    M, K = x.shape
    N = w.shape[0]
    tm = tm or (512 if _BIG_VMEM else 256)
    tn = _pick_tile(N, tn or 256, 128)
    tk = _pick_tile(K, tk or (1024 if _BIG_VMEM else 512), 128)
    tm = min(tm, _round_up(M, 8))
    Mp = _round_up(M, tm)
    if Mp != M:
        x = jnp.pad(x, ((0, Mp - M), (0, 0)))
    grid = (Mp // tm, N // tn, K // tk)
    out = pl.pallas_call(
        _linear_kernel,
        grid_spec=pltpu.PrefetchScalarGridSpec(
            num_scalar_prefetch=0,
            grid=grid,
            in_specs=[pl.BlockSpec((tm, tk), lambda i, j, k: (i, k)),
                      pl.BlockSpec((tn, tk), lambda i, j, k: (j, k)),
                      pl.BlockSpec((1, tn), lambda i, j, k: (0, j))],
            out_specs=pl.BlockSpec((tm, tn), lambda i, j, k: (i, j)),
            scratch_shapes=[pltpu.VMEM((tm, tn), jnp.float32)]),
        out_shape=jax.ShapeDtypeStruct((Mp, N), out_dtype),
        compiler_params=pltpu.CompilerParams(
            dimension_semantics=("parallel", "parallel", "arbitrary"),
            vmem_limit_bytes=_VMEM_LIMIT),
    )(x, w, b.reshape(1, N).astype(jnp.float32))
    return out[:M] if Mp != M else out


# -------------------------- flash-style attention --------------------------

def _attn_kernel(bmin_ref, bmax_ref, q_ref, k_ref, v_ref, vals_ref, bkt_ref,
                 o_ref, m_sc, l_sc, acc_sc, rel_sc, *, bkt_batched):
    sk = pl.program_id(3)

    @pl.when(sk == 0)
    def _():
        m_sc[...] = jnp.full_like(m_sc, -jnp.inf)
        l_sc[...] = jnp.zeros_like(l_sc)
        acc_sc[...] = jnp.zeros_like(acc_sc)

    q = q_ref[0]                                  # (hg, Tq, D)   bf16 (pre-scaled)
    k = k_ref[0]                                  # (hg, Skv, D)  bf16
    v = v_ref[0]                                  # (hg, Skv, D)  bf16
    vals = vals_ref[0].astype(jnp.float32)        # (hg, Tq, NB)
    bkt = bkt_ref[0][None, :, :]                  # (1, Tq, Skv)  int32, head-shared

    # attn_weights_main = bmm(q, k^T) for the whole head group (bf16 MXU, f32 acc).
    s = jnp.einsum('htd,hsd->hts', q, k, preferred_element_type=jnp.float32)

    # main_stream_relative_logits gather: rel[h, t, s] = vals[h, t, bkt[t, s]].
    # Only the buckets that can occur in this (Tq, Skv) tile are visited; the
    # per-tile [lo, hi] range arrives via scalar prefetch (SMEM).
    nT = pl.num_programs(2)
    nS = pl.num_programs(3)
    b_idx = pl.program_id(0) if bkt_batched else 0
    flat = (b_idx * nT + pl.program_id(2)) * nS + sk
    lo = bmin_ref[flat]
    hi = bmax_ref[flat]

    hg, tq, nb = vals.shape
    b_iota = lax.broadcasted_iota(jnp.int32, (hg, tq, nb), 2)

    rel_sc[...] = jnp.zeros_like(rel_sc)

    def bucket_body(kb, carry):
        # Column kb of vals via a cheap masked lane-reduce (no dynamic lane
        # slicing); the select broadcasts it over the key axis.
        vk = jnp.sum(jnp.where(b_iota == kb, vals, 0.0), axis=-1, keepdims=True)
        rel_sc[...] = jnp.where(bkt == kb, vk, rel_sc[...])
        return carry

    lax.fori_loop(lo, hi + 1, bucket_body, 0)
    s = s + rel_sc[...]

    # online (flash) softmax over the key axis (dropout p=0.0 -> no-op)
    m_new = jnp.maximum(m_sc[...], jnp.max(s, axis=-1, keepdims=True))
    alpha = jnp.exp(m_sc[...] - m_new)
    p = jnp.exp(s - m_new)
    l_sc[...] = alpha * l_sc[...] + jnp.sum(p, axis=-1, keepdims=True)
    acc_sc[...] = alpha * acc_sc[...] + jnp.einsum(
        'hts,hsd->htd', p.astype(v.dtype), v, preferred_element_type=jnp.float32)
    m_sc[...] = m_new

    @pl.when(sk == pl.num_programs(3) - 1)
    def _():
        inv = pl.reciprocal(l_sc[...], approx=False)   # exact; once per q tile
        o_ref[0] = (acc_sc[...] * inv).astype(o_ref.dtype)


def pallas_ngram_attention(q, k, v, vals, buckets, *, tq=None, tskv=None,
                           head_group=None):
    """q/k/v: (B, H, T, D) bf16; vals: (B, H, T, NUM_BUCKETS) bf16;
    buckets: (B, T, S) or (1, T, S) int32 (shared over heads, optionally batch)."""
    B, H, T, D = q.shape
    S = k.shape[2]
    NB = vals.shape[-1]

    if head_group is None:
        head_group = 4 if H % 4 == 0 else (2 if H % 2 == 0 else 1)
    hg = max(d for d in range(1, min(head_group, H) + 1) if H % d == 0)

    tq = _pick_tile(T, tq or 256, 8)
    tskv = _pick_tile(S, tskv or (1024 if _BIG_VMEM else 512), 128)
    nT, nS = T // tq, S // tskv

    # Per-tile active-bucket range -> SMEM via scalar prefetch.
    Bb = buckets.shape[0]
    btiles = buckets.reshape(Bb, nT, tq, nS, tskv).astype(jnp.int32)
    bmin = btiles.min(axis=(2, 4)).reshape(-1)
    bmax = btiles.max(axis=(2, 4)).reshape(-1)

    bkt_batched = Bb != 1
    if bkt_batched:
        bkt_map = lambda b, g, ti, sk, *_: (b, ti, sk)
    else:
        bkt_map = lambda b, g, ti, sk, *_: (0, ti, sk)

    kernel = functools.partial(_attn_kernel, bkt_batched=bkt_batched)

    # TODO(synk): pipeline_mode=pl.Buffered(3) on the k/v specs (and int8 buckets)
    # once profiling shows the K/V / bucket DMA exposed after the gather fix.
    return pl.pallas_call(
        kernel,
        grid_spec=pltpu.PrefetchScalarGridSpec(
            num_scalar_prefetch=2,
            grid=(B, H // hg, nT, nS),
            in_specs=[
                pl.BlockSpec((1, hg, tq, D),   lambda b, g, ti, sk, *_: (b, g, ti, 0)),
                pl.BlockSpec((1, hg, tskv, D), lambda b, g, ti, sk, *_: (b, g, sk, 0)),
                pl.BlockSpec((1, hg, tskv, D), lambda b, g, ti, sk, *_: (b, g, sk, 0)),
                pl.BlockSpec((1, hg, tq, NB),  lambda b, g, ti, sk, *_: (b, g, ti, 0)),
                pl.BlockSpec((1, tq, tskv),    bkt_map),
            ],
            out_specs=pl.BlockSpec((1, hg, tq, D),
                                   lambda b, g, ti, sk, *_: (b, g, ti, 0)),
            scratch_shapes=[pltpu.VMEM((hg, tq, 1), jnp.float32),       # running max
                            pltpu.VMEM((hg, tq, 1), jnp.float32),       # running sum
                            pltpu.VMEM((hg, tq, D), jnp.float32),       # running acc
                            pltpu.VMEM((hg, tq, tskv), jnp.float32)]),  # rel logits
        out_shape=jax.ShapeDtypeStruct((B, H, T, D), jnp.bfloat16),
        compiler_params=pltpu.CompilerParams(
            dimension_semantics=("parallel", "parallel", "parallel", "arbitrary"),
            vmem_limit_bytes=_VMEM_LIMIT),
    )(bmin, bmax, q, k, v, vals, buckets.astype(jnp.int32))


# ----------------------- parameter setup / glue (JAX) ----------------------

def init_params(key, embed_dim, num_heads, num_buckets=NUM_BUCKETS):
    E = embed_dim
    k1, k2, k3, k4 = jax.random.split(key, 4)

    def xavier_uniform(k, shape):
        fan_out, fan_in = shape
        bound = math.sqrt(6.0 / (fan_in + fan_out))
        return jax.random.uniform(k, shape, jnp.float32, -bound, bound)

    return {
        "in_proj_weight": xavier_uniform(k1, (3 * E, E)),
        "in_proj_bias": jnp.zeros((3 * E,), jnp.float32),
        "out_proj_weight": xavier_uniform(k2, (E, E)),
        "out_proj_bias": jnp.zeros((E,), jnp.float32),
        "relative_linear_weight": xavier_uniform(k3, (num_buckets * num_heads, E)),
        "relative_linear_bias": jax.random.uniform(
            k4, (num_buckets * num_heads,), jnp.float32,
            -1.0 / math.sqrt(E), 1.0 / math.sqrt(E)),
    }


def relative_positions_bucket(relative_positions,
                              num_buckets=NUM_BUCKETS,
                              max_distance=RELATIVE_MAX_DISTANCE):
    # _relative_positions_bucket(..., bidirectional=False)
    n = -relative_positions
    n = jnp.maximum(n, 0)
    max_exact = num_buckets // 2
    is_small = n < max_exact
    n_f = jnp.maximum(n, 1).astype(jnp.float32)   # log(0) guard; masked by is_small
    val_if_large = max_exact + (jnp.log(n_f / max_exact)
                                / math.log(max_distance / max_exact)
                                * (num_buckets - max_exact))
    val_if_large = jnp.minimum(val_if_large, float(num_buckets - 1)).astype(jnp.int32)
    return jnp.where(is_small, n.astype(jnp.int32), val_if_large)


def cal_main_stream_buckets(real_positions):
    # real_positions: (B, T) absolute positions -> i_buckets_main_stream (B, T, S)
    rel = real_positions[:, None, :] - real_positions[:, :, None]  # pos_s - pos_t
    return relative_positions_bucket(rel)


def ngram_mha_nar_forward(params, query, i_buckets_main_stream, num_heads):
    """Self-attention NAR forward: query (T, B, E) -> (T, B, E).
    i_buckets_main_stream: (B, T, T) int32, or (1, T, T) when positions are
    shared across the batch (the usual NAR case)."""
    T, B, E = query.shape
    H = num_heads
    D = E // H
    scaling = D ** (-0.5)

    # Fold `q *= scaling` into the q rows of the in-projection (weights-only op).
    row_scale = jnp.concatenate([jnp.full((E,), scaling, jnp.float32),
                                 jnp.ones((2 * E,), jnp.float32)])
    w_in = (params["in_proj_weight"] * row_scale[:, None]).astype(jnp.bfloat16)
    b_in = params["in_proj_bias"] * row_scale

    # Single (T,B,E)->(B,T,E) transpose; downstream stays batch-major and bf16.
    x_bt = query.transpose(1, 0, 2).reshape(B * T, E).astype(jnp.bfloat16)

    # q, k, v = in_proj_qkv(query)
    qkv = pallas_linear(x_bt, w_in, b_in, out_dtype=jnp.bfloat16)    # (B*T, 3E)
    qkv = qkv.reshape(B, T, 3, H, D).transpose(2, 0, 3, 1, 4)        # (3,B,H,T,D) bf16
    q_b, k_b, v_b = qkv[0], qkv[1], qkv[2]

    # relative_linear(query.transpose(0,1)); weight rows permuted host-side to
    # head-major so the output slices per head without a bucket-major reshuffle.
    w_rel = (params["relative_linear_weight"]
             .reshape(NUM_BUCKETS, H, E).transpose(1, 0, 2).reshape(H * NUM_BUCKETS, E))
    b_rel = (params["relative_linear_bias"]
             .reshape(NUM_BUCKETS, H).transpose(1, 0).reshape(H * NUM_BUCKETS))
    vals = pallas_linear(x_bt, w_rel.astype(jnp.bfloat16), b_rel,
                         out_dtype=jnp.bfloat16)                     # (B*T, H*NB)
    vals = vals.reshape(B, T, H, NUM_BUCKETS).transpose(0, 2, 1, 3)  # (B,H,T,NB)

    buckets = i_buckets_main_stream.astype(jnp.int32)                # (B or 1, T, S)

    # attention hot path (bmm + relative-logit gather + flash softmax + bmm)
    attn = pallas_ngram_attention(q_b, k_b, v_b, vals, buckets)      # (B,H,T,D) bf16

    # out_proj, back to (T, B, E) f32
    attn2d = attn.transpose(0, 2, 1, 3).reshape(B * T, E)            # (B*T, E) bf16
    out = pallas_linear(attn2d, params["out_proj_weight"].astype(jnp.bfloat16),
                        params["out_proj_bias"], out_dtype=jnp.float32)
    # TODO(synk): incremental_state / key_padding_mask / bias_kv / self_attn_mask /
    # add_zero_attn / relative-stream (ngram) branches are not exercised by the
    # NAR forward and are not implemented.
    return out.reshape(B, T, E).transpose(1, 0, 2)


# ----------------------------- pure-JAX reference ---------------------------

def reference_forward(params, query, i_buckets, num_heads):
    T, B, E = query.shape
    H = num_heads
    D = E // H
    scaling = D ** (-0.5)
    i_buckets = jnp.broadcast_to(i_buckets, (B, T, T))
    qkv = query @ params["in_proj_weight"].T + params["in_proj_bias"]
    q, k, v = jnp.split(qkv, 3, axis=-1)
    q = q * scaling
    q = q.reshape(T, B * H, D).transpose(1, 0, 2)
    k = k.reshape(T, B * H, D).transpose(1, 0, 2)
    v = v.reshape(T, B * H, D).transpose(1, 0, 2)
    attn_w = jnp.einsum('btd,bsd->bts', q, k)
    vals = (query.transpose(1, 0, 2) @ params["relative_linear_weight"].T
            + params["relative_linear_bias"])
    vals = vals.reshape(B, T, NUM_BUCKETS, H).transpose(0, 3, 1, 2)
    vals = vals.reshape(B * H, T, NUM_BUCKETS)
    bkt = jnp.broadcast_to(i_buckets[:, None], (B, H, T, T)).reshape(B * H, T, T)
    rel = jnp.take_along_axis(vals, bkt, axis=-1)
    attn_w = jax.nn.softmax(attn_w + rel, axis=-1)
    attn = jnp.einsum('bts,bsd->btd', attn_w, v)
    attn = attn.transpose(1, 0, 2).reshape(T, B, E)
    return attn @ params["out_proj_weight"].T + params["out_proj_bias"]


if __name__ == "__main__":
    T, B, E, H = 8, 2, 32, 4   # tgt_len, batch, embed_dim, num_heads (head_dim=8)
    key = jax.random.PRNGKey(0)
    kq, kp = jax.random.split(key)
    query = jax.random.normal(kq, (T, B, E), jnp.float32)
    params = init_params(kp, E, H)

    # i_buckets_main_stream as produced by cal_pretrain_relative_positions
    real_positions = jnp.broadcast_to(jnp.arange(1, T + 1)[None, :], (B, T))
    i_buckets = cal_main_stream_buckets(real_positions)   # (B, T, S) int32

    fwd = jax.jit(ngram_mha_nar_forward, static_argnums=(3,))
    # NAR positions are shared across the batch -> pass the deduplicated (1,T,S) slab.
    out = fwd(params, query, i_buckets[:1], H)
    out = jax.block_until_ready(out)

    ref = reference_forward(params, query, i_buckets, H)
    assert out.shape == (T, B, E)
    # tolerance sized for the bf16 MXU / bf16 intermediate path (f32 accumulators)
    err = float(jnp.max(jnp.abs(out - ref)))
    assert err < 5e-2, err
    print("KERNEL_OK")
</pallas_src>

<mosaic_0001>
module attributes {stable_mosaic.version = 11 : i64} {
  func.func @_linear_kernel(%arg0: i32, %arg1: i32, %arg2: i32, %arg3: memref<16x32xbf16, #tpu.memory_space<vmem>>, %arg4: memref<96x32xbf16, #tpu.memory_space<vmem>>, %arg5: memref<1x96xf32, #tpu.memory_space<vmem>>, %arg6: memref<16x96xbf16, #tpu.memory_space<vmem>>, %arg7: memref<16x96xf32, #tpu.memory_space<vmem>>) attributes {dimension_semantics = [#tpu.dimension_semantics<parallel>, #tpu.dimension_semantics<parallel>, #tpu.dimension_semantics<arbitrary>], iteration_bounds = array<i64: 1, 1, 1>, scalar_prefetch = 0 : i64, scratch_operands = 1 : i64, tpu.core_type = #tpu.core_type<tc>, window_params = [{transform_indices = @transform_0, window_bounds = array<i64: 16, 32>}, {transform_indices = @transform_1, window_bounds = array<i64: 96, 32>}, {transform_indices = @transform_2, window_bounds = array<i64: 1, 96>}, {transform_indices = @transform_3, window_bounds = array<i64: 16, 96>}]} {
    %c0_i32 = arith.constant 0 : i32
    %0 = arith.cmpi eq, %arg2, %c0_i32 : i32
    %1 = arith.extui %0 : i1 to i32
    %c0_i32_0 = arith.constant 0 : i32
    %2 = arith.cmpi ne, %1, %c0_i32_0 : i32
    scf.if %2 {
      %cst_10 = arith.constant 0.000000e+00 : f32
      %12 = vector.broadcast %cst_10 : f32 to vector<16x96xf32>
      %c0_11 = arith.constant 0 : index
      %c0_12 = arith.constant 0 : index
      %13 = vector.load %arg7[%c0_11, %c0_12] : memref<16x96xf32, #tpu.memory_space<vmem>>, vector<16x96xf32>
      tpu.vector_store %arg7[%c0_11, %c0_12], %12 {strides = array<i32>} : memref<16x96xf32, #tpu.memory_space<vmem>>, vector<16x96xf32>,
    } else {
    }
    %c0 = arith.constant 0 : index
    %c0_1 = arith.constant 0 : index
    %3 = vector.load %arg7[%c0, %c0_1] : memref<16x96xf32, #tpu.memory_space<vmem>>, vector<16x96xf32>
    %c0_2 = arith.constant 0 : index
    %c0_3 = arith.constant 0 : index
    %4 = vector.load %arg3[%c0_2, %c0_3] : memref<16x32xbf16, #tpu.memory_space<vmem>>, vector<16x32xbf16>
    %c0_4 = arith.constant 0 : index
    %c0_5 = arith.constant 0 : index
    %5 = vector.load %arg4[%c0_4, %c0_5] : memref<96x32xbf16, #tpu.memory_space<vmem>>, vector<96x32xbf16>
    %cst = arith.constant dense<0.000000e+00> : vector<16x96xf32>
    %6 = tpu.matmul %4, %5, %cst {dimension_numbers = #tpu.dot_dimension_numbers<[1], [1], [0], [0], [0, 0, 1, 0], [], []>} : vector<16x32xbf16>, vector<96x32xbf16>, vector<16x96xf32> -> vector<16x96xf32>
    %7 = arith.addf %3, %6 : vector<16x96xf32>
    %c0_6 = arith.constant 0 : index
    %c0_7 = arith.constant 0 : index
    %8 = vector.load %arg7[%c0_6, %c0_7] : memref<16x96xf32, #tpu.memory_space<vmem>>, vector<16x96xf32>
    tpu.vector_store %arg7[%c0_6, %c0_7], %7 {strides = array<i32>} : memref<16x96xf32, #tpu.memory_space<vmem>>, vector<16x96xf32>,
    %c0_i32_8 = arith.constant 0 : i32
    %9 = arith.cmpi eq, %arg2, %c0_i32_8 : i32
    %10 = arith.extui %9 : i1 to i32
    %c0_i32_9 = arith.constant 0 : i32
    %11 = arith.cmpi ne, %10, %c0_i32_9 : i32
    scf.if %11 {
      %c0_10 = arith.constant 0 : index
      %c0_11 = arith.constant 0 : index
      %12 = vector.load %arg7[%c0_10, %c0_11] : memref<16x96xf32, #tpu.memory_space<vmem>>, vector<16x96xf32>
      %c0_12 = arith.constant 0 : index
      %c0_13 = arith.constant 0 : index
      %13 = vector.load %arg5[%c0_12, %c0_13] : memref<1x96xf32, #tpu.memory_space<vmem>>, vector<1x96xf32>
      %14 = vector.broadcast %13 : vector<1x96xf32> to vector<16x96xf32>
      %15 = arith.addf %12, %14 : vector<16x96xf32>
      %16 = arith.truncf %15 : vector<16x96xf32> to vector<16x96xbf16>
      %c0_14 = arith.constant 0 : index
      %c0_15 = arith.constant 0 : index
      %17 = vector.load %arg6[%c0_14, %c0_15] : memref<16x96xbf16, #tpu.memory_space<vmem>>, vector<16x96xbf16>
      tpu.vector_store %arg6[%c0_14, %c0_15], %16 {strides = array<i32>} : memref<16x96xbf16, #tpu.memory_space<vmem>>, vector<16x96xbf16>,
    } else {
    }
    return
  }
  func.func @transform_0(%arg0: i32, %arg1: i32, %arg2: i32) -> (i32, i32) {
    %c0_i32 = arith.constant 0 : i32
    return %arg0, %arg2 : i32, i32
  }
  func.func @transform_1(%arg0: i32, %arg1: i32, %arg2: i32) -> (i32, i32) {
    %c0_i32 = arith.constant 0 : i32
    return %arg1, %arg2 : i32, i32
  }
  func.func @transform_2(%arg0: i32, %arg1: i32, %arg2: i32) -> (i32, i32) {
    %c0_i32 = arith.constant 0 : i32
    %c0_i32_0 = arith.constant 0 : i32
    return %c0_i32, %arg1 : i32, i32
  }
  func.func @transform_3(%arg0: i32, %arg1: i32, %arg2: i32) -> (i32, i32) {
    %c0_i32 = arith.constant 0 : i32
    return %arg0, %arg1 : i32, i32
  }
}

module attributes {stable_mosaic.version = 11 : i64} {
  func.func @_linear_kernel(%arg0: i32, %arg1: i32, %arg2: i32, %arg3: memref<16x32xbf16, #tpu.memory_space<vmem>>, %arg4: memref<128x32xbf16, #tpu.memory_space<vmem>>, %arg5: memref<1x128xf32, #tpu.memory_space<vmem>>, %arg6: memref<16x128xbf16, #tpu.memory_space<vmem>>, %arg7: memref<16x128xf32, #tpu.memory_space<vmem>>) attributes {dimension_semantics = [#tpu.dimension_semantics<parallel>, #tpu.dimension_semantics<parallel>, #tpu.dimension_semantics<arbitrary>], iteration_bounds = array<i64: 1, 1, 1>, scalar_prefetch = 0 : i64, scratch_operands = 1 : i64, tpu.core_type = #tpu.core_type<tc>, window_params = [{transform_indices = @transform_0, window_bounds = array<i64: 16, 32>}, {transform_indices = @transform_1, window_bounds = array<i64: 128, 32>}, {transform_indices = @transform_2, window_bounds = array<i64: 1, 128>}, {transform_indices = @transform_3, window_bounds = array<i64: 16, 128>}]} {
    %c0_i32 = arith.constant 0 : i32
    %0 = arith.cmpi eq, %arg2, %c0_i32 : i32
    %1 = arith.extui %0 : i1 to i32
    %c0_i32_0 = arith.constant 0 : i32
    %2 = arith.cmpi ne, %1, %c0_i32_0 : i32
    scf.if %2 {
      %cst_10 = arith.constant 0.000000e+00 : f32
      %12 = vector.broadcast %cst_10 : f32 to vector<16x128xf32>
      %c0_11 = arith.constant 0 : index
      %c0_12 = arith.constant 0 : index
      %13 = vector.load %arg7[%c0_11, %c0_12] : memref<16x128xf32, #tpu.memory_space<vmem>>, vector<16x128xf32>
      tpu.vector_store %arg7[%c0_11, %c0_12], %12 {strides = array<i32>} : memref<16x128xf32, #tpu.memory_space<vmem>>, vector<16x128xf32>,
    } else {
    }
    %c0 = arith.constant 0 : index
    %c0_1 = arith.constant 0 : index
    %3 = vector.load %arg7[%c0, %c0_1] : memref<16x128xf32, #tpu.memory_space<vmem>>, vector<16x128xf32>
    %c0_2 = arith.constant 0 : index
    %c0_3 = arith.constant 0 : index
    %4 = vector.load %arg3[%c0_2, %c0_3] : memref<16x32xbf16, #tpu.memory_space<vmem>>, vector<16x32xbf16>
    %c0_4 = arith.constant 0 : index
    %c0_5 = arith.constant 0 : index
    %5 = vector.load %arg4[%c0_4, %c0_5] : memref<128x32xbf16, #tpu.memory_space<vmem>>, vector<128x32xbf16>
    %cst = arith.constant dense<0.000000e+00> : vector<16x128xf32>
    %6 = tpu.matmul %4, %5, %cst {dimension_numbers = #tpu.dot_dimension_numbers<[1], [1], [0], [0], [0, 0, 1, 0], [], []>} : vector<16x32xbf16>, vector<128x32xbf16>, vector<16x128xf32> -> vector<16x128xf32>
    %7 = arith.addf %3, %6 : vector<16x128xf32>
    %c0_6 = arith.constant 0 : index
    %c0_7 = arith.constant 0 : index
    %8 = vector.load %arg7[%c0_6, %c0_7] : memref<16x128xf32, #tpu.memory_space<vmem>>, vector<16x128xf32>
    tpu.vector_store %arg7[%c0_6, %c0_7], %7 {strides = array<i32>} : memref<16x128xf32, #tpu.memory_space<vmem>>, vector<16x128xf32>,
    %c0_i32_8 = arith.constant 0 : i32
    %9 = arith.cmpi eq, %arg2, %c0_i32_8 : i32
    %10 = arith.extui %9 : i1 to i32
    %c0_i32_9 = arith.constant 0 : i32
    %11 = arith.cmpi ne, %10, %c0_i32_9 : i32
    scf.if %11 {
      %c0_10 = arith.constant 0 : index
      %c0_11 = arith.constant 0 : index
      %12 = vector.load %arg7[%c0_10, %c0_11] : memref<16x128xf32, #tpu.memory_space<vmem>>, vector<16x128xf32>
      %c0_12 = arith.constant 0 : index
      %c0_13 = arith.constant 0 : index
      %13 = vector.load %arg5[%c0_12, %c0_13] : memref<1x128xf32, #tpu.memory_space<vmem>>, vector<1x128xf32>
      %14 = vector.broadcast %13 : vector<1x128xf32> to vector<16x128xf32>
      %15 = arith.addf %12, %14 : vector<16x128xf32>
      %16 = arith.truncf %15 : vector<16x128xf32> to vector<16x128xbf16>
      %c0_14 = arith.constant 0 : index
      %c0_15 = arith.constant 0 : index
      %17 = vector.load %arg6[%c0_14, %c0_15] : memref<16x128xbf16, #tpu.memory_space<vmem>>, vector<16x128xbf16>
      tpu.vector_store %arg6[%c0_14, %c0_15], %16 {strides = array<i32>} : memref<16x128xbf16, #tpu.memory_space<vmem>>, vector<16x128xbf16>,
    } else {
    }
    return
  }
  func.func @transform_0(%arg0: i32, %arg1: i32, %arg2: i32) -> (i32, i32) {
    %c0_i32 = arith.constant 0 : i32
    return %arg0, %arg2 : i32, i32
  }
  func.func @transform_1(%arg0: i32, %arg1: i32, %arg2: i32) -> (i32, i32) {
    %c0_i32 = arith.constant 0 : i32
    return %arg1, %arg2 : i32, i32
  }
  func.func @transform_2(%arg0: i32, %arg1: i32, %arg2: i32) -> (i32, i32) {
    %c0_i32 = arith.constant 0 : i32
    %c0_i32_0 = arith.constant 0 : i32
    return %c0_i32, %arg1 : i32, i32
  }
  func.func @transform_3(%arg0: i32, %arg1: i32, %arg2: i32) -> (i32, i32) {
    %c0_i32 = arith.constant 0 : i32
    return %arg0, %arg1 : i32, i32
  }
}

module attributes {stable_mosaic.version = 11 : i64} {
  func.func @_attn_kernel(%arg0: i32, %arg1: i32, %arg2: i32, %arg3: i32, %arg4: memref<1xi32, #tpu.memory_space<smem>>, %arg5: memref<1xi32, #tpu.memory_space<smem>>, %arg6: memref<1x4x8x8xbf16, #tpu.memory_space<vmem>>, %arg7: memref<1x4x8x8xbf16, #tpu.memory_space<vmem>>, %arg8: memref<1x4x8x8xbf16, #tpu.memory_space<vmem>>, %arg9: memref<1x4x8x32xbf16, #tpu.memory_space<vmem>>, %arg10: memref<1x8x8xi32, #tpu.memory_space<vmem>>, %arg11: memref<1x4x8x8xbf16, #tpu.memory_space<vmem>>, %arg12: memref<4x8x1xf32, #tpu.memory_space<vmem>>, %arg13: memref<4x8x1xf32, #tpu.memory_space<vmem>>, %arg14: memref<4x8x8xf32, #tpu.memory_space<vmem>>, %arg15: memref<4x8x8xf32, #tpu.memory_space<vmem>>) attributes {dimension_semantics = [#tpu.dimension_semantics<parallel>, #tpu.dimension_semantics<parallel>, #tpu.dimension_semantics<parallel>, #tpu.dimension_semantics<arbitrary>], iteration_bounds = array<i64: 2, 1, 1, 1>, scalar_prefetch = 2 : i64, scratch_operands = 4 : i64, tpu.core_type = #tpu.core_type<tc>, window_params = [{transform_indices = @transform_0, window_bounds = array<i64: 1, 4, 8, 8>}, {transform_indices = @transform_1, window_bounds = array<i64: 1, 4, 8, 8>}, {transform_indices = @transform_2, window_bounds = array<i64: 1, 4, 8, 8>}, {transform_indices = @transform_3, window_bounds = array<i64: 1, 4, 8, 32>}, {transform_indices = @transform_4, window_bounds = array<i64: 1, 8, 8>}, {transform_indices = @transform_5, window_bounds = array<i64: 1, 4, 8, 8>}]} {
    %c0_i32 = arith.constant 0 : i32
    %0 = arith.cmpi eq, %arg3, %c0_i32 : i32
    %1 = arith.extui %0 : i1 to i32
    %c0_i32_0 = arith.constant 0 : i32
    %2 = arith.cmpi ne, %1, %c0_i32_0 : i32
    scf.if %2 {
      %cst_56 = arith.constant 0xFF800000 : f32
      %58 = vector.broadcast %cst_56 : f32 to vector<4x8x1xf32>
      %c0_57 = arith.constant 0 : index
      %c0_58 = arith.constant 0 : index
      %c0_59 = arith.constant 0 : index
      %59 = vector.load %arg12[%c0_57, %c0_58, %c0_59] : memref<4x8x1xf32, #tpu.memory_space<vmem>>, vector<4x8x1xf32>
      tpu.vector_store %arg12[%c0_57, %c0_58, %c0_59], %58 {strides = array<i32>} : memref<4x8x1xf32, #tpu.memory_space<vmem>>, vector<4x8x1xf32>,
      %cst_60 = arith.constant 0.000000e+00 : f32
      %60 = vector.broadcast %cst_60 : f32 to vector<4x8x1xf32>
      %c0_61 = arith.constant 0 : index
      %c0_62 = arith.constant 0 : index
      %c0_63 = arith.constant 0 : index
      %61 = vector.load %arg13[%c0_61, %c0_62, %c0_63] : memref<4x8x1xf32, #tpu.memory_space<vmem>>, vector<4x8x1xf32>
      tpu.vector_store %arg13[%c0_61, %c0_62, %c0_63], %60 {strides = array<i32>} : memref<4x8x1xf32, #tpu.memory_space<vmem>>, vector<4x8x1xf32>,
      %cst_64 = arith.constant 0.000000e+00 : f32
      %62 = vector.broadcast %cst_64 : f32 to vector<4x8x8xf32>
      %c0_65 = arith.constant 0 : index
      %c0_66 = arith.constant 0 : index
      %c0_67 = arith.constant 0 : index
      %63 = vector.load %arg14[%c0_65, %c0_66, %c0_67] : memref<4x8x8xf32, #tpu.memory_space<vmem>>, vector<4x8x8xf32>
      tpu.vector_store %arg14[%c0_65, %c0_66, %c0_67], %62 {strides = array<i32>} : memref<4x8x8xf32, #tpu.memory_space<vmem>>, vector<4x8x8xf32>,
    } else {
    }
    %c0 = arith.constant 0 : index
    %c0_1 = arith.constant 0 : index
    %c0_2 = arith.constant 0 : index
    %c0_3 = arith.constant 0 : index
    %3 = vector.load %arg6[%c0, %c0_1, %c0_2, %c0_3] : memref<1x4x8x8xbf16, #tpu.memory_space<vmem>>, vector<1x4x8x8xbf16>
    %4 = vector.shape_cast %3 : vector<1x4x8x8xbf16> to vector<4x8x8xbf16>
    %c0_4 = arith.constant 0 : index
    %c0_5 = arith.constant 0 : index
    %c0_6 = arith.constant 0 : index
    %c0_7 = arith.constant 0 : index
    %5 = vector.load %arg7[%c0_4, %c0_5, %c0_6, %c0_7] : memref<1x4x8x8xbf16, #tpu.memory_space<vmem>>, vector<1x4x8x8xbf16>
    %6 = vector.shape_cast %5 : vector<1x4x8x8xbf16> to vector<4x8x8xbf16>
    %c0_8 = arith.constant 0 : index
    %c0_9 = arith.constant 0 : index
    %c0_10 = arith.constant 0 : index
    %c0_11 = arith.constant 0 : index
    %7 = vector.load %arg8[%c0_8, %c0_9, %c0_10, %c0_11] : memref<1x4x8x8xbf16, #tpu.memory_space<vmem>>, vector<1x4x8x8xbf16>
    %8 = vector.shape_cast %7 : vector<1x4x8x8xbf16> to vector<4x8x8xbf16>
    %c0_12 = arith.constant 0 : index
    %c0_13 = arith.constant 0 : index
    %c0_14 = arith.constant 0 : index
    %c0_15 = arith.constant 0 : index
    %9 = vector.load %arg9[%c0_12, %c0_13, %c0_14, %c0_15] : memref<1x4x8x32xbf16, #tpu.memory_space<vmem>>, vector<1x4x8x32xbf16>
    %10 = vector.shape_cast %9 : vector<1x4x8x32xbf16> to vector<4x8x32xbf16>
    %11 = arith.extf %10 : vector<4x8x32xbf16> to vector<4x8x32xf32>
    %c0_16 = arith.constant 0 : index
    %c0_17 = arith.constant 0 : index
    %c0_18 = arith.constant 0 : index
    %12 = vector.load %arg10[%c0_16, %c0_17, %c0_18] : memref<1x8x8xi32, #tpu.memory_space<vmem>>, vector<1x8x8xi32>
    %13 = vector.shape_cast %12 : vector<1x8x8xi32> to vector<8x8xi32>
    %14 = vector.shape_cast %13 : vector<8x8xi32> to vector<1x8x8xi32>
    "tpu.trace_start"() <{level = 10 : i32, message = "htd,hsd->hts"}> : () -> ()
    %cst = arith.constant dense<0.000000e+00> : vector<4x8x8xf32>
    %15 = tpu.matmul %4, %6, %cst {dimension_numbers = #tpu.dot_dimension_numbers<[2], [2], [1], [1], [0, 0, 0, 1, 1, 1], [0], [0]>} : vector<4x8x8xbf16>, vector<4x8x8xbf16>, vector<4x8x8xf32> -> vector<4x8x8xf32>
    "tpu.trace_stop"() : () -> ()
    %c0_i32_19 = arith.constant 0 : i32
    %16 = arith.addi %c0_i32_19, %arg2 : i32
    %c1_i32 = arith.constant 1 : i32
    %17 = arith.muli %16, %c1_i32 : i32
    %18 = arith.addi %17, %arg3 : i32
    %19 = arith.index_cast %18 : i32 to index
    %20 = memref.load %arg4[%19] : memref<1xi32, #tpu.memory_space<smem>>
    %21 = arith.index_cast %18 : i32 to index
    %22 = memref.load %arg5[%21] : memref<1xi32, #tpu.memory_space<smem>>
    %23 = tpu.iota {dimensions = array<i32: 2>} : vector<4x8x32xi32>
    %cst_20 = arith.constant 0.000000e+00 : f32
    %24 = vector.broadcast %cst_20 : f32 to vector<4x8x8xf32>
    %c0_21 = arith.constant 0 : index
    %c0_22 = arith.constant 0 : index
    %c0_23 = arith.constant 0 : index
    %25 = vector.load %arg15[%c0_21, %c0_22, %c0_23] : memref<4x8x8xf32, #tpu.memory_space<vmem>>, vector<4x8x8xf32>
    tpu.vector_store %arg15[%c0_21, %c0_22, %c0_23], %24 {strides = array<i32>} : memref<4x8x8xf32, #tpu.memory_space<vmem>>, vector<4x8x8xf32>,
    %c1_i32_24 = arith.constant 1 : i32
    %26 = arith.addi %22, %c1_i32_24 : i32
    %c0_i32_25 = arith.constant 0 : i32
    %27 = arith.subi %26, %20 : i32
    %28 = arith.addi %20, %27 : i32
    %c1_i32_26 = arith.constant 1 : i32
    scf.for %arg16 = %20 to %28 step %c1_i32_26  : i32 {
      %58 = vector.broadcast %arg16 : i32 to vector<4x8x32xi32>
      %59 = arith.cmpi eq, %23, %58 : vector<4x8x32xi32>
      %cst_56 = arith.constant 0.000000e+00 : f32
      %60 = vector.broadcast %cst_56 : f32 to vector<4x8x32xf32>
      %61 = arith.select %59, %11, %60 : vector<4x8x32xi1>, vector<4x8x32xf32>
      %cst_57 = arith.constant dense<0.000000e+00> : vector<4x8xf32>
      %62 = vector.multi_reduction <add>, %61, %cst_57 [2] : vector<4x8x32xf32> to vector<4x8xf32>
      %63 = vector.shape_cast %62 : vector<4x8xf32> to vector<4x8x1xf32>
      %64 = vector.broadcast %arg16 : i32 to vector<1x8x8xi32>
      %65 = arith.cmpi eq, %14, %64 : vector<1x8x8xi32>
      %c0_58 = arith.constant 0 : index
      %c0_59 = arith.constant 0 : index
      %c0_60 = arith.constant 0 : index
      %66 = vector.load %arg15[%c0_58, %c0_59, %c0_60] : memref<4x8x8xf32, #tpu.memory_space<vmem>>, vector<4x8x8xf32>
      %67 = vector.shape_cast %65 : vector<1x8x8xi1> to vector<1x8x8xi1>
      %68 = vector.broadcast %67 : vector<1x8x8xi1> to vector<4x8x8xi1>
      %69 = vector.shape_cast %63 : vector<4x8x1xf32> to vector<4x8x1xf32>
      %70 = vector.broadcast %69 : vector<4x8x1xf32> to vector<4x8x8xf32>
      %71 = arith.select %68, %70, %66 : vector<4x8x8xi1>, vector<4x8x8xf32>
      %c0_61 = arith.constant 0 : index
      %c0_62 = arith.constant 0 : index
      %c0_63 = arith.constant 0 : index
      %72 = vector.load %arg15[%c0_61, %c0_62, %c0_63] : memref<4x8x8xf32, #tpu.memory_space<vmem>>, vector<4x8x8xf32>
      tpu.vector_store %arg15[%c0_61, %c0_62, %c0_63], %71 {strides = array<i32>} : memref<4x8x8xf32, #tpu.memory_space<vmem>>, vector<4x8x8xf32>,
    }
    %c0_27 = arith.constant 0 : index
    %c0_28 = arith.constant 0 : index
    %c0_29 = arith.constant 0 : index
    %29 = vector.load %arg15[%c0_27, %c0_28, %c0_29] : memref<4x8x8xf32, #tpu.memory_space<vmem>>, vector<4x8x8xf32>
    %30 = arith.addf %15, %29 : vector<4x8x8xf32>
    %c0_30 = arith.constant 0 : index
    %c0_31 = arith.constant 0 : index
    %c0_32 = arith.constant 0 : index
    %31 = vector.load %arg12[%c0_30, %c0_31, %c0_32] : memref<4x8x1xf32, #tpu.memory_space<vmem>>, vector<4x8x1xf32>
    %cst_33 = arith.constant dense<0xFF800000> : vector<4x8xf32>
    %32 = vector.multi_reduction <maximumf>, %30, %cst_33 [2] : vector<4x8x8xf32> to vector<4x8xf32>
    %33 = vector.shape_cast %32 : vector<4x8xf32> to vector<4x8x1xf32>
    %34 = arith.maximumf %31, %33 : vector<4x8x1xf32>
    %c0_34 = arith.constant 0 : index
    %c0_35 = arith.constant 0 : index
    %c0_36 = arith.constant 0 : index
    %35 = vector.load %arg12[%c0_34, %c0_35, %c0_36] : memref<4x8x1xf32, #tpu.memory_space<vmem>>, vector<4x8x1xf32>
    %36 = arith.subf %35, %34 : vector<4x8x1xf32>
    %37 = math.exp %36 : vector<4x8x1xf32>
    %38 = vector.broadcast %34 : vector<4x8x1xf32> to vector<4x8x8xf32>
    %39 = arith.subf %30, %38 : vector<4x8x8xf32>
    %40 = math.exp %39 : vector<4x8x8xf32>
    %c0_37 = arith.constant 0 : index
    %c0_38 = arith.constant 0 : index
    %c0_39 = arith.constant 0 : index
    %41 = vector.load %arg13[%c0_37, %c0_38, %c0_39] : memref<4x8x1xf32, #tpu.memory_space<vmem>>, vector<4x8x1xf32>
    %42 = arith.mulf %37, %41 : vector<4x8x1xf32>
    %cst_40 = arith.constant dense<0.000000e+00> : vector<4x8xf32>
    %43 = vector.multi_reduction <add>, %40, %cst_40 [2] : vector<4x8x8xf32> to vector<4x8xf32>
    %44 = vector.shape_cast %43 : vector<4x8xf32> to vector<4x8x1xf32>
    %45 = arith.addf %42, %44 : vector<4x8x1xf32>
    %c0_41 = arith.constant 0 : index
    %c0_42 = arith.constant 0 : index
    %c0_43 = arith.constant 0 : index
    %46 = vector.load %arg13[%c0_41, %c0_42, %c0_43] : memref<4x8x1xf32, #tpu.memory_space<vmem>>, vector<4x8x1xf32>
    tpu.vector_store %arg13[%c0_41, %c0_42, %c0_43], %45 {strides = array<i32>} : memref<4x8x1xf32, #tpu.memory_space<vmem>>, vector<4x8x1xf32>,
    %c0_44 = arith.constant 0 : index
    %c0_45 = arith.constant 0 : index
    %c0_46 = arith.constant 0 : index
    %47 = vector.load %arg14[%c0_44, %c0_45, %c0_46] : memref<4x8x8xf32, #tpu.memory_space<vmem>>, vector<4x8x8xf32>
    %48 = vector.broadcast %37 : vector<4x8x1xf32> to vector<4x8x8xf32>
    %49 = arith.mulf %48, %47 : vector<4x8x8xf32>
    %50 = arith.truncf %40 : vector<4x8x8xf32> to vector<4x8x8xbf16>
    "tpu.trace_start"() <{level = 10 : i32, message = "hts,hsd->htd"}> : () -> ()
    %cst_47 = arith.constant dense<0.000000e+00> : vector<4x8x8xf32>
    %51 = tpu.matmul %50, %8, %cst_47 {dimension_numbers = #tpu.dot_dimension_numbers<[2], [1], [1], [2], [0, 0, 0, 1, 1, 2], [0], [0]>} : vector<4x8x8xbf16>, vector<4x8x8xbf16>, vector<4x8x8xf32> -> vector<4x8x8xf32>
    "tpu.trace_stop"() : () -> ()
    %52 = arith.addf %49, %51 : vector<4x8x8xf32>
    %c0_48 = arith.constant 0 : index
    %c0_49 = arith.constant 0 : index
    %c0_50 = arith.constant 0 : index
    %53 = vector.load %arg14[%c0_48, %c0_49, %c0_50] : memref<4x8x8xf32, #tpu.memory_space<vmem>>, vector<4x8x8xf32>
    tpu.vector_store %arg14[%c0_48, %c0_49, %c0_50], %52 {strides = array<i32>} : memref<4x8x8xf32, #tpu.memory_space<vmem>>, vector<4x8x8xf32>,
    %c0_51 = arith.constant 0 : index
    %c0_52 = arith.constant 0 : index
    %c0_53 = arith.constant 0 : index
    %54 = vector.load %arg12[%c0_51, %c0_52, %c0_53] : memref<4x8x1xf32, #tpu.memory_space<vmem>>, vector<4x8x1xf32>
    tpu.vector_store %arg12[%c0_51, %c0_52, %c0_53], %34 {strides = array<i32>} : memref<4x8x1xf32, #tpu.memory_space<vmem>>, vector<4x8x1xf32>,
    %c0_i32_54 = arith.constant 0 : i32
    %55 = arith.cmpi eq, %arg3, %c0_i32_54 : i32
    %56 = arith.extui %55 : i1 to i32
    %c0_i32_55 = arith.constant 0 : i32
    %57 = arith.cmpi ne, %56, %c0_i32_55 : i32
    scf.if %57 {
      %c0_56 = arith.constant 0 : index
      %c0_57 = arith.constant 0 : index
      %c0_58 = arith.constant 0 : index
      %58 = vector.load %arg13[%c0_56, %c0_57, %c0_58] : memref<4x8x1xf32, #tpu.memory_space<vmem>>, vector<4x8x1xf32>
      %59 = tpu.reciprocal %58 : vector<4x8x1xf32> -> vector<4x8x1xf32>
      %c0_59 = arith.constant 0 : index
      %c0_60 = arith.constant 0 : index
      %c0_61 = arith.constant 0 : index
      %60 = vector.load %arg14[%c0_59, %c0_60, %c0_61] : memref<4x8x8xf32, #tpu.memory_space<vmem>>, vector<4x8x8xf32>
      %61 = vector.broadcast %59 : vector<4x8x1xf32> to vector<4x8x8xf32>
      %62 = arith.mulf %60, %61 : vector<4x8x8xf32>
      %63 = arith.truncf %62 : vector<4x8x8xf32> to vector<4x8x8xbf16>
      %c0_62 = arith.constant 0 : index
      %c0_63 = arith.constant 0 : index
      %c0_64 = arith.constant 0 : index
      %c0_65 = arith.constant 0 : index
      %64 = vector.load %arg11[%c0_62, %c0_63, %c0_64, %c0_65] : memref<1x4x8x8xbf16, #tpu.memory_space<vmem>>, vector<1x4x8x8xbf16>
      %65 = vector.shape_cast %64 : vector<1x4x8x8xbf16> to vector<4x8x8xbf16>
      %66 = vector.shape_cast %63 : vector<4x8x8xbf16> to vector<1x4x8x8xbf16>
      tpu.vector_store %arg11[%c0_62, %c0_63, %c0_64, %c0_65], %66 {strides = array<i32>} : memref<1x4x8x8xbf16, #tpu.memory_space<vmem>>, vector<1x4x8x8xbf16>,
    } else {
    }
    return
  }
  func.func @transform_0(%arg0: i32, %arg1: i32, %arg2: i32, %arg3: i32, %arg4: memref<1xi32, #tpu.memory_space<smem>>, %arg5: memref<1xi32, #tpu.memory_space<smem>>) -> (i32, i32, i32, i32) {
    %c0_i32 = arith.constant 0 : i32
    %c0_i32_0 = arith.constant 0 : i32
    return %arg0, %arg1, %arg2, %c0_i32 : i32, i32, i32, i32
  }
  func.func @transform_1(%arg0: i32, %arg1: i32, %arg2: i32, %arg3: i32, %arg4: memref<1xi32, #tpu.memory_space<smem>>, %arg5: memref<1xi32, #tpu.memory_space<smem>>) -> (i32, i32, i32, i32) {
    %c0_i32 = arith.constant 0 : i32
    %c0_i32_0 = arith.constant 0 : i32
    return %arg0, %arg1, %arg3, %c0_i32 : i32, i32, i32, i32
  }
  func.func @transform_2(%arg0: i32, %arg1: i32, %arg2: i32, %arg3: i32, %arg4: memref<1xi32, #tpu.memory_space<smem>>, %arg5: memref<1xi32, #tpu.memory_space<smem>>) -> (i32, i32, i32, i32) {
    %c0_i32 = arith.constant 0 : i32
    %c0_i32_0 = arith.constant 0 : i32
    return %arg0, %arg1, %arg3, %c0_i32 : i32, i32, i32, i32
  }
  func.func @transform_3(%arg0: i32, %arg1: i32, %arg2: i32, %arg3: i32, %arg4: memref<1xi32, #tpu.memory_space<smem>>, %arg5: memref<1xi32, #tpu.memory_space<smem>>) -> (i32, i32, i32, i32) {
    %c0_i32 = arith.constant 0 : i32
    %c0_i32_0 = arith.constant 0 : i32
    return %arg0, %arg1, %arg2, %c0_i32 : i32, i32, i32, i32
  }
  func.func @transform_4(%arg0: i32, %arg1: i32, %arg2: i32, %arg3: i32, %arg4: memref<1xi32, #tpu.memory_space<smem>>, %arg5: memref<1xi32, #tpu.memory_space<smem>>) -> (i32, i32, i32) {
    %c0_i32 = arith.constant 0 : i32
    %c0_i32_0 = arith.constant 0 : i32
    return %c0_i32, %arg2, %arg3 : i32, i32, i32
  }
  func.func @transform_5(%arg0: i32, %arg1: i32, %arg2: i32, %arg3: i32, %arg4: memref<1xi32, #tpu.memory_space<smem>>, %arg5: memref<1xi32, #tpu.memory_space<smem>>) -> (i32, i32, i32, i32) {
    %c0_i32 = arith.constant 0 : i32
    %c0_i32_0 = arith.constant 0 : i32
    return %arg0, %arg1, %arg2, %c0_i32 : i32, i32, i32, i32
  }
}

module attributes {stable_mosaic.version = 11 : i64} {
  func.func @_linear_kernel(%arg0: i32, %arg1: i32, %arg2: i32, %arg3: memref<16x32xbf16, #tpu.memory_space<vmem>>, %arg4: memref<32x32xbf16, #tpu.memory_space<vmem>>, %arg5: memref<1x32xf32, #tpu.memory_space<vmem>>, %arg6: memref<16x32xf32, #tpu.memory_space<vmem>>, %arg7: memref<16x32xf32, #tpu.memory_space<vmem>>) attributes {dimension_semantics = [#tpu.dimension_semantics<parallel>, #tpu.dimension_semantics<parallel>, #tpu.dimension_semantics<arbitrary>], iteration_bounds = array<i64: 1, 1, 1>, scalar_prefetch = 0 : i64, scratch_operands = 1 : i64, tpu.core_type = #tpu.core_type<tc>, window_params = [{transform_indices = @transform_0, window_bounds = array<i64: 16, 32>}, {transform_indices = @transform_1, window_bounds = array<i64: 32, 32>}, {transform_indices = @transform_2, window_bounds = array<i64: 1, 32>}, {transform_indices = @transform_3, window_bounds = array<i64: 16, 32>}]} {
    %c0_i32 = arith.constant 0 : i32
    %0 = arith.cmpi eq, %arg2, %c0_i32 : i32
    %1 = arith.extui %0 : i1 to i32
    %c0_i32_0 = arith.constant 0 : i32
    %2 = arith.cmpi ne, %1, %c0_i32_0 : i32
    scf.if %2 {
      %cst_10 = arith.constant 0.000000e+00 : f32
      %12 = vector.broadcast %cst_10 : f32 to vector<16x32xf32>
      %c0_11 = arith.constant 0 : index
      %c0_12 = arith.constant 0 : index
      %13 = vector.load %arg7[%c0_11, %c0_12] : memref<16x32xf32, #tpu.memory_space<vmem>>, vector<16x32xf32>
      tpu.vector_store %arg7[%c0_11, %c0_12], %12 {strides = array<i32>} : memref<16x32xf32, #tpu.memory_space<vmem>>, vector<16x32xf32>,
    } else {
    }
    %c0 = arith.constant 0 : index
    %c0_1 = arith.constant 0 : index
    %3 = vector.load %arg7[%c0, %c0_1] : memref<16x32xf32, #tpu.memory_space<vmem>>, vector<16x32xf32>
    %c0_2 = arith.constant 0 : index
    %c0_3 = arith.constant 0 : index
    %4 = vector.load %arg3[%c0_2, %c0_3] : memref<16x32xbf16, #tpu.memory_space<vmem>>, vector<16x32xbf16>
    %c0_4 = arith.constant 0 : index
    %c0_5 = arith.constant 0 : index
    %5 = vector.load %arg4[%c0_4, %c0_5] : memref<32x32xbf16, #tpu.memory_space<vmem>>, vector<32x32xbf16>
    %cst = arith.constant dense<0.000000e+00> : vector<16x32xf32>
    %6 = tpu.matmul %4, %5, %cst {dimension_numbers = #tpu.dot_dimension_numbers<[1], [1], [0], [0], [0, 0, 1, 0], [], []>} : vector<16x32xbf16>, vector<32x32xbf16>, vector<16x32xf32> -> vector<16x32xf32>
    %7 = arith.addf %3, %6 : vector<16x32xf32>
    %c0_6 = arith.constant 0 : index
    %c0_7 = arith.constant 0 : index
    %8 = vector.load %arg7[%c0_6, %c0_7] : memref<16x32xf32, #tpu.memory_space<vmem>>, vector<16x32xf32>
    tpu.vector_store %arg7[%c0_6, %c0_7], %7 {strides = array<i32>} : memref<16x32xf32, #tpu.memory_space<vmem>>, vector<16x32xf32>,
    %c0_i32_8 = arith.constant 0 : i32
    %9 = arith.cmpi eq, %arg2, %c0_i32_8 : i32
    %10 = arith.extui %9 : i1 to i32
    %c0_i32_9 = arith.constant 0 : i32
    %11 = arith.cmpi ne, %10, %c0_i32_9 : i32
    scf.if %11 {
      %c0_10 = arith.constant 0 : index
      %c0_11 = arith.constant 0 : index
      %12 = vector.load %arg7[%c0_10, %c0_11] : memref<16x32xf32, #tpu.memory_space<vmem>>, vector<16x32xf32>
      %c0_12 = arith.constant 0 : index
      %c0_13 = arith.constant 0 : index
      %13 = vector.load %arg5[%c0_12, %c0_13] : memref<1x32xf32, #tpu.memory_space<vmem>>, vector<1x32xf32>
      %14 = vector.broadcast %13 : vector<1x32xf32> to vector<16x32xf32>
      %15 = arith.addf %12, %14 : vector<16x32xf32>
      %c0_14 = arith.constant 0 : index
      %c0_15 = arith.constant 0 : index
      %16 = vector.load %arg6[%c0_14, %c0_15] : memref<16x32xf32, #tpu.memory_space<vmem>>, vector<16x32xf32>
      tpu.vector_store %arg6[%c0_14, %c0_15], %15 {strides = array<i32>} : memref<16x32xf32, #tpu.memory_space<vmem>>, vector<16x32xf32>,
    } else {
    }
    return
  }
  func.func @transform_0(%arg0: i32, %arg1: i32, %arg2: i32) -> (i32, i32) {
    %c0_i32 = arith.constant 0 : i32
    return %arg0, %arg2 : i32, i32
  }
  func.func @transform_1(%arg0: i32, %arg1: i32, %arg2: i32) -> (i32, i32) {
    %c0_i32 = arith.constant 0 : i32
    return %arg1, %arg2 : i32, i32
  }
  func.func @transform_2(%arg0: i32, %arg1: i32, %arg2: i32) -> (i32, i32) {
    %c0_i32 = arith.constant 0 : i32
    %c0_i32_0 = arith.constant 0 : i32
    return %c0_i32, %arg1 : i32, i32
  }
  func.func @transform_3(%arg0: i32, %arg1: i32, %arg2: i32) -> (i32, i32) {
    %c0_i32 = arith.constant 0 : i32
    return %arg0, %arg1 : i32, i32
  }
}

</mosaic_0001>

<llo_original>
// kernel: ngram_mha_nar_forward.5
$region0: #{ngram_mha_nar_forward.5}
  #allocation0 [shape = 'u32[]', space=smem, size = 0x4, offset = 0x4, fixed_abs, tag = 'smem constant byte address 0x4 - core index']
  #allocation1 [shape = 'u32[144,128]{1,0:T(1,128)}', space=vmem, size = 0x12000, scoped, tag = 'internal scratch']
  #allocation2 [shape = 'f32[16,128]{1,0:T(8,128)}', space=vmem, size = 0x2000, scoped, tag = 'scratch operand']
  %s0 = inlined_call_operand.vmem [shape: bf16[16,32], index: 0, kind: input, shape index: {}]
  %s1 = inlined_call_operand.vmem [shape: bf16[128,32], index: 1, kind: input, shape index: {}]
  %s2 = inlined_call_operand.vmem [shape: f32[1,128], index: 2, kind: input, shape index: {}]
  %s3 = inlined_call_operand.vmem [shape: bf16[16,128], index: 3, kind: output, shape index: {}]
  %s4 = sld [smem:[#allocation0]]
  $region30: #{ngram_mha_nar_forward.5} parent=0
    _
  %s6 = ssub.s32 1, %s4
  %s7 = scalar_select 0, %s6, %s4
  // Predicated region
  $region2: #{ngram_mha_nar_forward.5} parent=0 // pred_check
    _
  $region3: #{ngram_mha_nar_forward.5} parent=0 // pred_check_branch
    %9 = sbr.rel (0) target = $region5
  $region4: #{ngram_mha_nar_forward.5} parent=0 // pred_region
    _
  $region5: #{ngram_mha_nar_forward.5} parent=0 // pred_fallthru
    _
  // Predicated region
  $region6: #{ngram_mha_nar_forward.5} parent=0 // pred_check
    _
  $region7: #{ngram_mha_nar_forward.5} parent=0 // pred_check_branch
    %11 = sbr.rel (0) target = $region9
  $region8: #{ngram_mha_nar_forward.5} parent=0 // pred_region
    _
  $region9: #{ngram_mha_nar_forward.5} parent=0 // pred_fallthru
    _
  // Predicated region
  $region10: #{ngram_mha_nar_forward.5} parent=0 // pred_check
    _
  $region11: #{ngram_mha_nar_forward.5} parent=0 // pred_check_branch
    %13 = sbr.rel (0) target = $region13
  $region12: #{ngram_mha_nar_forward.5} parent=0 // pred_region
    _
  $region13: #{ngram_mha_nar_forward.5} parent=0 // pred_fallthru
    _
  %p15 = scmp.eq.s32.totalorder 0, 0
  // Predicated region
  $region14: #{ngram_mha_nar_forward.5} parent=0 // pred_check
    %p16 = pneg %p15
  $region15: #{ngram_mha_nar_forward.5} parent=0 // pred_check_branch
    %18 = sbr.rel (%p16) target = $region17
  $region16: #{ngram_mha_nar_forward.5} parent=0 // pred_region
    %19 = vst [vmem:[#allocation2] sm:$0xff] 0.0
    %20 = vst [vmem:[#allocation2 + $0x8] sm:$0xff] 0.0
  $region17: #{ngram_mha_nar_forward.5} parent=0 // pred_fallthru
    _
  %v21 = vld [vmem:[#allocation2] sm:$0xff]
  %v22 = vld [vmem:[#allocation2 + $0x8] sm:$0xff]
  %v23 = vld [vmem:[%s0] sm:$0xf]
  %v24 = vld [vmem:[%s0 + $0x4] sm:$0xf]
  %v25 = vld [vmem:[%s1] sm:$0xf]
  %v26 = vld [vmem:[%s1 + $0x4] sm:$0xf]
  %v27 = vld [vmem:[%s1 + $0x8] sm:$0xf]
  %v28 = vld [vmem:[%s1 + $0xc] sm:$0xf]
  %v29 = vld [vmem:[%s1 + $0x10] sm:$0xf]
  %v30 = vld [vmem:[%s1 + $0x14] sm:$0xf]
  %v31 = vld [vmem:[%s1 + $0x18] sm:$0xf]
  %v32 = vld [vmem:[%s1 + $0x1c] sm:$0xf]
  %v33 = vld [vmem:[%s1 + $0x20] sm:$0xf]
  %v34 = vld [vmem:[%s1 + $0x24] sm:$0xf]
  %v35 = vld [vmem:[%s1 + $0x28] sm:$0xf]
  %v36 = vld [vmem:[%s1 + $0x2c] sm:$0xf]
  %v37 = vld [vmem:[%s1 + $0x30] sm:$0xf]
  %v38 = vld [vmem:[%s1 + $0x34] sm:$0xf]
  %v39 = vld [vmem:[%s1 + $0x38] sm:$0xf]
  %v40 = vld [vmem:[%s1 + $0x3c] sm:$0xf]
  %v43 = vunpack.c.l.b16 %v23
  %v44 = vunpack.c.l.b16 %v24
  %v45 = vpack.c.b16 %v44, %v43
  %v62 = vunpack.c.l.b16 %v25
  %v63 = vunpack.c.l.b16 %v26
  %v64 = vunpack.c.l.b16 %v27
  %v65 = vunpack.c.l.b16 %v28
  %v66 = vunpack.c.l.b16 %v29
  %v67 = vunpack.c.l.b16 %v30
  %v68 = vunpack.c.l.b16 %v31
  %v69 = vunpack.c.l.b16 %v32
  %v70 = vunpack.c.l.b16 %v33
  %v71 = vunpack.c.l.b16 %v34
  %v72 = vunpack.c.l.b16 %v35
  %v73 = vunpack.c.l.b16 %v36
  %v74 = vunpack.c.l.b16 %v37
  %v75 = vunpack.c.l.b16 %v38
  %v76 = vunpack.c.l.b16 %v39
  %v77 = vunpack.c.l.b16 %v40
  %v78 = vpack.c.b16 %v63, %v62
  %v79 = vpack.c.b16 %v65, %v64
  %v80 = vpack.c.b16 %v67, %v66
  %v81 = vpack.c.b16 %v69, %v68
  %v82 = vpack.c.b16 %v71, %v70
  %v83 = vpack.c.b16 %v73, %v72
  %v84 = vpack.c.b16 %v75, %v74
  %v85 = vpack.c.b16 %v77, %v76
  %vm86 = vcmask 261120
  %v88 = vsel %vm86, %v45, 0
  %v91 = vsel %vm86, %v78, 0
  %v94 = vsel %vm86, %v79, 0
  %v97 = vsel %vm86, %v80, 0
  %v100 = vsel %vm86, %v81, 0
  %v103 = vsel %vm86, %v82, 0
  %v106 = vsel %vm86, %v83, 0
  %v109 = vsel %vm86, %v84, 0
  %v112 = vsel %vm86, %v85, 0
  %114 = vmatprep.subr.bf16.mxu0 0
  %115 = vmatpush1.bf16.xpose.msra.mxu0 %v91
  %116 = vmatprep.subr.bf16.mxu0 0
  %117 = vmatpush1.bf16.xpose.msra.mxu0 %v94
  %118 = vmatprep.subr.bf16.mxu0 0
  %119 = vmatpush1.bf16.xpose.msra.mxu0 %v97
  %120 = vmatprep.subr.bf16.mxu0 0
  %121 = vmatpush1.bf16.xpose.msra.mxu0 %v100
  %122 = vmatprep.subr.bf16.mxu0 0
  %123 = vmatpush1.bf16.xpose.msra.mxu0 %v103
  %124 = vmatprep.subr.bf16.mxu0 0
  %125 = vmatpush1.bf16.xpose.msra.mxu0 %v106
  %126 = vmatprep.subr.bf16.mxu0 0
  %127 = vmatpush1.bf16.xpose.msra.mxu0 %v109
  %128 = vmatprep.subr.bf16.mxu0 0
  %129 = vmatpush1.bf16.xpose.msra.mxu0 %v112
  %130 = vmatprep.subr.bf16.mxu0 0
  %131 = vmatpush1.bf16.xpose.msra.mxu0 0
  %132 = vmatprep.subr.bf16.mxu0 0
  %133 = vmatpush1.bf16.xpose.msra.mxu0 0
  %134 = vmatprep.subr.bf16.mxu0 0
  %135 = vmatpush1.bf16.xpose.msra.mxu0 0
  %136 = vmatprep.subr.bf16.mxu0 0
  %137 = vmatpush1.bf16.xpose.msra.mxu0 0
  %138 = vmatprep.subr.bf16.mxu0 0
  %139 = vmatpush1.bf16.xpose.msra.mxu0 0
  %140 = vmatprep.subr.bf16.mxu0 0
  %141 = vmatpush1.bf16.xpose.msra.mxu0 0
  %142 = vmatprep.subr.bf16.mxu0 0
  %143 = vmatpush1.bf16.xpose.msra.mxu0 0
  %144 = vmatprep.subr.bf16.mxu0 0
  %145 = vmatpush1.bf16.xpose.msra.mxu0 0
  %146 = vmatprep.mubr.bf16.mxu0 0
  %147 = vmatmul.mubr.bf16.gmra.mrb[0].mxu0 %v88
  %v148 = vpop.f32.mrb[0].mxu0
  %v149 = vadd.f32 0.0, %v148
  %v150 = vpop.f32.mrb[0].mxu0
  %v151 = vpop.f32.mrb[0].mxu0
  %v152 = vadd.f32 0.0, %v151
  %v153 = vpop.f32.mrb[0].mxu0
  %154 = vdwg.mxu0
  %v155 = vadd.f32 %v21, %v149
  %v156 = vadd.f32 %v22, %v152
  %157 = vst [vmem:[#allocation2] sm:$0xff] %v155
  %158 = vst [vmem:[#allocation2 + $0x8] sm:$0xff] %v156
  // Predicated region
  $region18: #{ngram_mha_nar_forward.5} parent=0 // pred_check
    %p159 = pneg %p15
  $region19: #{ngram_mha_nar_forward.5} parent=0 // pred_check_branch
    %161 = sbr.rel (%p159) target = $region21
  $region20: #{ngram_mha_nar_forward.5} parent=0 // pred_region
    %v162 = vld [vmem:[#allocation2] sm:$0xff]
    %v163 = vld [vmem:[#allocation2 + $0x8] sm:$0xff]
    %v164 = vld [vmem:[%s2] sm:$0x1]
    %v166 = vlaneseq
    %v167 = vshrl.u32 %v166, 7
    %v168 = vsub.s32 0, %v167
    %v169 = vrot.slane %v164, %v168
    %v171 = vadd.f32 %v162, %v169
    %v172 = vadd.f32 %v163, %v169
    %v173 = vpack.c.bf16 %v172, %v171
    %v175 = vunpack.c.l.b16 %v173
    %v176 = vunpack.c.h.b16 %v173
    %v177 = vpack.c.b16 %v175, %v175
    %v178 = vpack.c.b16 %v176, %v176
    %181 = vst [vmem:[%s3] sm:$0xf] %v177
    %182 = vst [vmem:[%s3 + $0x4] sm:$0xf] %v178
  $region21: #{ngram_mha_nar_forward.5} parent=0 // pred_fallthru
    _
  // Predicated region
  $region22: #{ngram_mha_nar_forward.5} parent=0 // pred_check
    _
  $region23: #{ngram_mha_nar_forward.5} parent=0 // pred_check_branch
    %184 = sbr.rel (0) target = $region25
  $region24: #{ngram_mha_nar_forward.5} parent=0 // pred_region
    _
  $region25: #{ngram_mha_nar_forward.5} parent=0 // pred_fallthru
    _
  // Predicated region
  $region26: #{ngram_mha_nar_forward.5} parent=0 // pred_check
    _
  $region27: #{ngram_mha_nar_forward.5} parent=0 // pred_check_branch
    %186 = sbr.rel (0) target = $region29
  $region28: #{ngram_mha_nar_forward.5} parent=0 // pred_region
    _
  $region29: #{ngram_mha_nar_forward.5} parent=0 // pred_fallthru
    _

// kernel: ngram_mha_nar_forward.4
$region0: #{ngram_mha_nar_forward.4}
  #allocation0 [shape = 'u32[]', space=smem, size = 0x4, offset = 0x4, fixed_abs, tag = 'smem constant byte address 0x4 - core index']
  #allocation1 [shape = 'u32[144,128]{1,0:T(1,128)}', space=vmem, size = 0x12000, scoped, tag = 'internal scratch']
  #allocation2 [shape = 'f32[16,96]{1,0:T(8,128)}', space=vmem, size = 0x2000, scoped, tag = 'scratch operand']
  %s0 = inlined_call_operand.vmem [shape: bf16[16,32], index: 0, kind: input, shape index: {}]
  %s1 = inlined_call_operand.vmem [shape: bf16[96,32], index: 1, kind: input, shape index: {}]
  %s2 = inlined_call_operand.vmem [shape: f32[1,96], index: 2, kind: input, shape index: {}]
  %s3 = inlined_call_operand.vmem [shape: bf16[16,96], index: 3, kind: output, shape index: {}]
  %s4 = sld [smem:[#allocation0]]
  $region30: #{ngram_mha_nar_forward.4} parent=0
    _
  %s6 = ssub.s32 1, %s4
  %s7 = scalar_select 0, %s6, %s4
  // Predicated region
  $region2: #{ngram_mha_nar_forward.4} parent=0 // pred_check
    _
  $region3: #{ngram_mha_nar_forward.4} parent=0 // pred_check_branch
    %9 = sbr.rel (0) target = $region5
  $region4: #{ngram_mha_nar_forward.4} parent=0 // pred_region
    _
  $region5: #{ngram_mha_nar_forward.4} parent=0 // pred_fallthru
    _
  // Predicated region
  $region6: #{ngram_mha_nar_forward.4} parent=0 // pred_check
    _
  $region7: #{ngram_mha_nar_forward.4} parent=0 // pred_check_branch
    %11 = sbr.rel (0) target = $region9
  $region8: #{ngram_mha_nar_forward.4} parent=0 // pred_region
    _
  $region9: #{ngram_mha_nar_forward.4} parent=0 // pred_fallthru
    _
  // Predicated region
  $region10: #{ngram_mha_nar_forward.4} parent=0 // pred_check
    _
  $region11: #{ngram_mha_nar_forward.4} parent=0 // pred_check_branch
    %13 = sbr.rel (0) target = $region13
  $region12: #{ngram_mha_nar_forward.4} parent=0 // pred_region
    _
  $region13: #{ngram_mha_nar_forward.4} parent=0 // pred_fallthru
    _
  %p15 = scmp.eq.s32.totalorder 0, 0
  // Predicated region
  $region14: #{ngram_mha_nar_forward.4} parent=0 // pred_check
    %p16 = pneg %p15
  $region15: #{ngram_mha_nar_forward.4} parent=0 // pred_check_branch
    %18 = sbr.rel (%p16) target = $region17
  $region16: #{ngram_mha_nar_forward.4} parent=0 // pred_region
    %vm19 = vcmask 785408
    %20 = vst.msk [vmem:[#allocation2] sm:$0xff] %vm19, 0.0
    %21 = vst.msk [vmem:[#allocation2 + $0x8] sm:$0xff] %vm19, 0.0
  $region17: #{ngram_mha_nar_forward.4} parent=0 // pred_fallthru
    _
  %v22 = vld [vmem:[#allocation2] sm:$0xff]
  %v23 = vld [vmem:[#allocation2 + $0x8] sm:$0xff]
  %v24 = vld [vmem:[%s0] sm:$0xf]
  %v25 = vld [vmem:[%s0 + $0x4] sm:$0xf]
  %v26 = vld [vmem:[%s1] sm:$0xf]
  %v27 = vld [vmem:[%s1 + $0x4] sm:$0xf]
  %v28 = vld [vmem:[%s1 + $0x8] sm:$0xf]
  %v29 = vld [vmem:[%s1 + $0xc] sm:$0xf]
  %v30 = vld [vmem:[%s1 + $0x10] sm:$0xf]
  %v31 = vld [vmem:[%s1 + $0x14] sm:$0xf]
  %v32 = vld [vmem:[%s1 + $0x18] sm:$0xf]
  %v33 = vld [vmem:[%s1 + $0x1c] sm:$0xf]
  %v34 = vld [vmem:[%s1 + $0x20] sm:$0xf]
  %v35 = vld [vmem:[%s1 + $0x24] sm:$0xf]
  %v36 = vld [vmem:[%s1 + $0x28] sm:$0xf]
  %v37 = vld [vmem:[%s1 + $0x2c] sm:$0xf]
  %v40 = vunpack.c.l.b16 %v24
  %v41 = vunpack.c.l.b16 %v25
  %v42 = vpack.c.b16 %v41, %v40
  %v55 = vunpack.c.l.b16 %v26
  %v56 = vunpack.c.l.b16 %v27
  %v57 = vunpack.c.l.b16 %v28
  %v58 = vunpack.c.l.b16 %v29
  %v59 = vunpack.c.l.b16 %v30
  %v60 = vunpack.c.l.b16 %v31
  %v61 = vunpack.c.l.b16 %v32
  %v62 = vunpack.c.l.b16 %v33
  %v63 = vunpack.c.l.b16 %v34
  %v64 = vunpack.c.l.b16 %v35
  %v65 = vunpack.c.l.b16 %v36
  %v66 = vunpack.c.l.b16 %v37
  %v67 = vpack.c.b16 %v56, %v55
  %v68 = vpack.c.b16 %v58, %v57
  %v69 = vpack.c.b16 %v60, %v59
  %v70 = vpack.c.b16 %v62, %v61
  %v71 = vpack.c.b16 %v64, %v63
  %v72 = vpack.c.b16 %v66, %v65
  %vm73 = vcmask 261120
  %v75 = vsel %vm73, %v42, 0
  %v78 = vsel %vm73, %v67, 0
  %v81 = vsel %vm73, %v68, 0
  %v84 = vsel %vm73, %v69, 0
  %v87 = vsel %vm73, %v70, 0
  %v90 = vsel %vm73, %v71, 0
  %v93 = vsel %vm73, %v72, 0
  %95 = vmatprep.subr.bf16.mxu0 0
  %96 = vmatpush1.bf16.xpose.msra.mxu0 %v78
  %97 = vmatprep.subr.bf16.mxu0 0
  %98 = vmatpush1.bf16.xpose.msra.mxu0 %v81
  %99 = vmatprep.subr.bf16.mxu0 0
  %100 = vmatpush1.bf16.xpose.msra.mxu0 %v84
  %101 = vmatprep.subr.bf16.mxu0 0
  %102 = vmatpush1.bf16.xpose.msra.mxu0 %v87
  %103 = vmatprep.subr.bf16.mxu0 0
  %104 = vmatpush1.bf16.xpose.msra.mxu0 %v90
  %105 = vmatprep.subr.bf16.mxu0 0
  %106 = vmatpush1.bf16.xpose.msra.mxu0 %v93
  %107 = vmatprep.subr.bf16.mxu0 0
  %108 = vmatpush1.bf16.xpose.msra.mxu0 0
  %109 = vmatprep.subr.bf16.mxu0 0
  %110 = vmatpush1.bf16.xpose.msra.mxu0 0
  %111 = vmatprep.subr.bf16.mxu0 0
  %112 = vmatpush1.bf16.xpose.msra.mxu0 0
  %113 = vmatprep.subr.bf16.mxu0 0
  %114 = vmatpush1.bf16.xpose.msra.mxu0 0
  %115 = vmatprep.subr.bf16.mxu0 0
  %116 = vmatpush1.bf16.xpose.msra.mxu0 0
  %117 = vmatprep.subr.bf16.mxu0 0
  %118 = vmatpush1.bf16.xpose.msra.mxu0 0
  %119 = vmatprep.subr.bf16.mxu0 0
  %120 = vmatpush1.bf16.xpose.msra.mxu0 0
  %121 = vmatprep.subr.bf16.mxu0 0
  %122 = vmatpush1.bf16.xpose.msra.mxu0 0
  %123 = vmatprep.subr.bf16.mxu0 0
  %124 = vmatpush1.bf16.xpose.msra.mxu0 0
  %125 = vmatprep.subr.bf16.mxu0 0
  %126 = vmatpush1.bf16.xpose.msra.mxu0 0
  %127 = vmatprep.mubr.bf16.mxu0 0
  %128 = vmatmul.mubr.bf16.gmra.mrb[0].mxu0 %v75
  %v129 = vpop.f32.mrb[0].mxu0
  %v130 = vadd.f32 0.0, %v129
  %v131 = vpop.f32.mrb[0].mxu0
  %v132 = vpop.f32.mrb[0].mxu0
  %v133 = vadd.f32 0.0, %v132
  %v134 = vpop.f32.mrb[0].mxu0
  %135 = vdwg.mxu0
  %v136 = vadd.f32 %v22, %v130
  %v137 = vadd.f32 %v23, %v133
  %vm138 = vcmask 785408
  %139 = vst.msk [vmem:[#allocation2] sm:$0xff] %vm138, %v136
  %140 = vst.msk [vmem:[#allocation2 + $0x8] sm:$0xff] %vm138, %v137
  // Predicated region
  $region18: #{ngram_mha_nar_forward.4} parent=0 // pred_check
    %p141 = pneg %p15
  $region19: #{ngram_mha_nar_forward.4} parent=0 // pred_check_branch
    %143 = sbr.rel (%p141) target = $region21
  $region20: #{ngram_mha_nar_forward.4} parent=0 // pred_region
    %v144 = vld [vmem:[#allocation2] sm:$0xff]
    %v145 = vld [vmem:[#allocation2 + $0x8] sm:$0xff]
    %v146 = vld [vmem:[%s2] sm:$0x1]
    %v148 = vlaneseq
    %v149 = vshrl.u32 %v148, 7
    %v150 = vsub.s32 0, %v149
    %v151 = vrot.slane %v146, %v150
    %v153 = vadd.f32 %v144, %v151
    %v154 = vadd.f32 %v145, %v151
    %v155 = vpack.c.bf16 %v154, %v153
    %v157 = vunpack.c.l.b16 %v155
    %v158 = vunpack.c.h.b16 %v155
    %v159 = vpack.c.b16 %v157, %v157
    %v160 = vpack.c.b16 %v158, %v158
    %vm163 = vcmask 781312
    %164 = vst.msk [vmem:[%s3] sm:$0xf] %vm163, %v159
    %165 = vst.msk [vmem:[%s3 + $0x4] sm:$0xf] %vm163, %v160
  $region21: #{ngram_mha_nar_forward.4} parent=0 // pred_fallthru
    _
  // Predicated region
  $region22: #{ngram_mha_nar_forward.4} parent=0 // pred_check
    _
  $region23: #{ngram_mha_nar_forward.4} parent=0 // pred_check_branch
    %167 = sbr.rel (0) target = $region25
  $region24: #{ngram_mha_nar_forward.4} parent=0 // pred_region
    _
  $region25: #{ngram_mha_nar_forward.4} parent=0 // pred_fallthru
    _
  // Predicated region
  $region26: #{ngram_mha_nar_forward.4} parent=0 // pred_check
    _
  $region27: #{ngram_mha_nar_forward.4} parent=0 // pred_check_branch
    %169 = sbr.rel (0) target = $region29
  $region28: #{ngram_mha_nar_forward.4} parent=0 // pred_region
    _
  $region29: #{ngram_mha_nar_forward.4} parent=0 // pred_fallthru
    _

// kernel: ngram_mha_nar_forward.7
$region0: #{ngram_mha_nar_forward.7}
  #allocation0 [shape = 'u32[]', space=smem, size = 0x4, offset = 0x4, fixed_abs, tag = 'smem constant byte address 0x4 - core index']
  #allocation1 [shape = 'u32[144,128]{1,0:T(1,128)}', space=vmem, size = 0x12000, scoped, tag = 'internal scratch']
  #allocation2 [shape = 'f32[16,32]{1,0:T(8,128)}', space=vmem, size = 0x2000, scoped, tag = 'scratch operand']
  %s0 = inlined_call_operand.vmem [shape: bf16[16,32], index: 0, kind: input, shape index: {}]
  %s1 = inlined_call_operand.vmem [shape: bf16[32,32], index: 1, kind: input, shape index: {}]
  %s2 = inlined_call_operand.vmem [shape: f32[1,32], index: 2, kind: input, shape index: {}]
  %s3 = inlined_call_operand.vmem [shape: f32[16,32], index: 3, kind: output, shape index: {}]
  %s4 = sld [smem:[#allocation0]]
  $region30: #{ngram_mha_nar_forward.7} parent=0
    _
  %s6 = ssub.s32 1, %s4
  %s7 = scalar_select 0, %s6, %s4
  // Predicated region
  $region2: #{ngram_mha_nar_forward.7} parent=0 // pred_check
    _
  $region3: #{ngram_mha_nar_forward.7} parent=0 // pred_check_branch
    %9 = sbr.rel (0) target = $region5
  $region4: #{ngram_mha_nar_forward.7} parent=0 // pred_region
    _
  $region5: #{ngram_mha_nar_forward.7} parent=0 // pred_fallthru
    _
  // Predicated region
  $region6: #{ngram_mha_nar_forward.7} parent=0 // pred_check
    _
  $region7: #{ngram_mha_nar_forward.7} parent=0 // pred_check_branch
    %11 = sbr.rel (0) target = $region9
  $region8: #{ngram_mha_nar_forward.7} parent=0 // pred_region
    _
  $region9: #{ngram_mha_nar_forward.7} parent=0 // pred_fallthru
    _
  // Predicated region
  $region10: #{ngram_mha_nar_forward.7} parent=0 // pred_check
    _
  $region11: #{ngram_mha_nar_forward.7} parent=0 // pred_check_branch
    %13 = sbr.rel (0) target = $region13
  $region12: #{ngram_mha_nar_forward.7} parent=0 // pred_region
    _
  $region13: #{ngram_mha_nar_forward.7} parent=0 // pred_fallthru
    _
  %p15 = scmp.eq.s32.totalorder 0, 0
  // Predicated region
  $region14: #{ngram_mha_nar_forward.7} parent=0 // pred_check
    %p16 = pneg %p15
  $region15: #{ngram_mha_nar_forward.7} parent=0 // pred_check_branch
    %18 = sbr.rel (%p16) target = $region17
  $region16: #{ngram_mha_nar_forward.7} parent=0 // pred_region
    %vm19 = vcmask 261120
    %20 = vst.msk [vmem:[#allocation2] sm:$0xff] %vm19, 0.0
    %21 = vst.msk [vmem:[#allocation2 + $0x8] sm:$0xff] %vm19, 0.0
  $region17: #{ngram_mha_nar_forward.7} parent=0 // pred_fallthru
    _
  %v22 = vld [vmem:[#allocation2] sm:$0xff]
  %v23 = vld [vmem:[#allocation2 + $0x8] sm:$0xff]
  %v24 = vld [vmem:[%s0] sm:$0xf]
  %v25 = vld [vmem:[%s0 + $0x4] sm:$0xf]
  %v26 = vld [vmem:[%s1] sm:$0xf]
  %v27 = vld [vmem:[%s1 + $0x4] sm:$0xf]
  %v28 = vld [vmem:[%s1 + $0x8] sm:$0xf]
  %v29 = vld [vmem:[%s1 + $0xc] sm:$0xf]
  %v32 = vunpack.c.l.b16 %v24
  %v33 = vunpack.c.l.b16 %v25
  %v34 = vpack.c.b16 %v33, %v32
  %v39 = vunpack.c.l.b16 %v26
  %v40 = vunpack.c.l.b16 %v27
  %v41 = vunpack.c.l.b16 %v28
  %v42 = vunpack.c.l.b16 %v29
  %v43 = vpack.c.b16 %v40, %v39
  %v44 = vpack.c.b16 %v42, %v41
  %vm45 = vcmask 261120
  %v47 = vsel %vm45, %v34, 0
  %v50 = vsel %vm45, %v43, 0
  %v53 = vsel %vm45, %v44, 0
  %55 = vmatprep.subr.bf16.mxu0 0
  %56 = vmatpush1.bf16.xpose.msra.mxu0 %v50
  %57 = vmatprep.subr.bf16.mxu0 0
  %58 = vmatpush1.bf16.xpose.msra.mxu0 %v53
  %59 = vmatprep.subr.bf16.mxu0 0
  %60 = vmatpush1.bf16.xpose.msra.mxu0 0
  %61 = vmatprep.subr.bf16.mxu0 0
  %62 = vmatpush1.bf16.xpose.msra.mxu0 0
  %63 = vmatprep.subr.bf16.mxu0 0
  %64 = vmatpush1.bf16.xpose.msra.mxu0 0
  %65 = vmatprep.subr.bf16.mxu0 0
  %66 = vmatpush1.bf16.xpose.msra.mxu0 0
  %67 = vmatprep.subr.bf16.mxu0 0
  %68 = vmatpush1.bf16.xpose.msra.mxu0 0
  %69 = vmatprep.subr.bf16.mxu0 0
  %70 = vmatpush1.bf16.xpose.msra.mxu0 0
  %71 = vmatprep.subr.bf16.mxu0 0
  %72 = vmatpush1.bf16.xpose.msra.mxu0 0
  %73 = vmatprep.subr.bf16.mxu0 0
  %74 = vmatpush1.bf16.xpose.msra.mxu0 0
  %75 = vmatprep.subr.bf16.mxu0 0
  %76 = vmatpush1.bf16.xpose.msra.mxu0 0
  %77 = vmatprep.subr.bf16.mxu0 0
  %78 = vmatpush1.bf16.xpose.msra.mxu0 0
  %79 = vmatprep.subr.bf16.mxu0 0
  %80 = vmatpush1.bf16.xpose.msra.mxu0 0
  %81 = vmatprep.subr.bf16.mxu0 0
  %82 = vmatpush1.bf16.xpose.msra.mxu0 0
  %83 = vmatprep.subr.bf16.mxu0 0
  %84 = vmatpush1.bf16.xpose.msra.mxu0 0
  %85 = vmatprep.subr.bf16.mxu0 0
  %86 = vmatpush1.bf16.xpose.msra.mxu0 0
  %87 = vmatprep.mubr.bf16.mxu0 0
  %88 = vmatmul.mubr.bf16.gmra.mrb[0].mxu0 %v47
  %v89 = vpop.f32.mrb[0].mxu0
  %v90 = vadd.f32 0.0, %v89
  %v91 = vpop.f32.mrb[0].mxu0
  %v92 = vpop.f32.mrb[0].mxu0
  %v93 = vadd.f32 0.0, %v92
  %v94 = vpop.f32.mrb[0].mxu0
  %95 = vdwg.mxu0
  %v96 = vadd.f32 %v22, %v90
  %v97 = vadd.f32 %v23, %v93
  %98 = vst.msk [vmem:[#allocation2] sm:$0xff] %vm45, %v96
  %99 = vst.msk [vmem:[#allocation2 + $0x8] sm:$0xff] %vm45, %v97
  // Predicated region
  $region18: #{ngram_mha_nar_forward.7} parent=0 // pred_check
    %p100 = pneg %p15
  $region19: #{ngram_mha_nar_forward.7} parent=0 // pred_check_branch
    %102 = sbr.rel (%p100) target = $region21
  $region20: #{ngram_mha_nar_forward.7} parent=0 // pred_region
    %v103 = vld [vmem:[#allocation2] sm:$0xff]
    %v104 = vld [vmem:[#allocation2 + $0x8] sm:$0xff]
    %v105 = vld [vmem:[%s2] sm:$0x1]
    %v107 = vlaneseq
    %v108 = vshrl.u32 %v107, 7
    %v109 = vsub.s32 0, %v108
    %v110 = vrot.slane %v105, %v109
    %v112 = vadd.f32 %v103, %v110
    %v113 = vadd.f32 %v104, %v110
    %114 = vst.msk [vmem:[%s3] sm:$0xff] %vm45, %v112
    %115 = vst.msk [vmem:[%s3 + $0x8] sm:$0xff] %vm45, %v113
  $region21: #{ngram_mha_nar_forward.7} parent=0 // pred_fallthru
    _
  // Predicated region
  $region22: #{ngram_mha_nar_forward.7} parent=0 // pred_check
    _
  $region23: #{ngram_mha_nar_forward.7} parent=0 // pred_check_branch
    %117 = sbr.rel (0) target = $region25
  $region24: #{ngram_mha_nar_forward.7} parent=0 // pred_region
    _
  $region25: #{ngram_mha_nar_forward.7} parent=0 // pred_fallthru
    _
  // Predicated region
  $region26: #{ngram_mha_nar_forward.7} parent=0 // pred_check
    _
  $region27: #{ngram_mha_nar_forward.7} parent=0 // pred_check_branch
    %119 = sbr.rel (0) target = $region29
  $region28: #{ngram_mha_nar_forward.7} parent=0 // pred_region
    _
  $region29: #{ngram_mha_nar_forward.7} parent=0 // pred_fallthru
    _

// kernel: ngram_mha_nar_forward.6
$region0: #{ngram_mha_nar_forward.6}
  #allocation0 [shape = 'u32[]', space=smem, size = 0x4, offset = 0x4, fixed_abs, tag = 'smem constant byte address 0x4 - core index']
  #allocation1 [shape = 'u32[144,128]{1,0:T(1,128)}', space=vmem, size = 0x12000, scoped, tag = 'internal scratch']
  #allocation2 [shape = 'f32[4,8,1]{2,1,0:T(8,128)}', space=vmem, size = 0x4000, scoped, tag = 'scratch operand']
  #allocation3 [shape = 'f32[4,8,1]{2,1,0:T(8,128)}', space=vmem, size = 0x4000, scoped, tag = 'scratch operand']
  #allocation4 [shape = 'f32[4,8,8]{2,1,0:T(8,128)}', space=vmem, size = 0x4000, scoped, tag = 'scratch operand']
  #allocation5 [shape = 'f32[4,8,8]{2,1,0:T(8,128)}', space=vmem, size = 0x4000, scoped, tag = 'scratch operand']
  #allocation6 [shape = 's32[1]{0}', space=sflag, size = 0x4, scoped, tag = 'scoped memory for ngram_mha_nar_forward.6']
  #allocation7 [shape = 's32[1]{0:T(128)S(6)}', space=smem, size = 0x200, scoped, tag = 'prefetched SMEM operand 0']
  #allocation8 [shape = 's32[1]{0:T(128)S(6)}', space=smem, size = 0x200, scoped, tag = 'prefetched SMEM operand 1']
  %s0 = inlined_call_operand.<no memory space> [shape: s32[1], index: 0, kind: input, shape index: {}]
  %s1 = inlined_call_operand.<no memory space> [shape: s32[1], index: 1, kind: input, shape index: {}]
  %s2 = inlined_call_operand.vmem [shape: bf16[2,4,8,8], index: 2, kind: input, shape index: {}]
  %s3 = inlined_call_operand.vmem [shape: bf16[2,4,8,8], index: 3, kind: input, shape index: {}]
  %s4 = inlined_call_operand.vmem [shape: bf16[2,4,8,8], index: 4, kind: input, shape index: {}]
  %s5 = inlined_call_operand.vmem [shape: bf16[2,4,8,32], index: 5, kind: input, shape index: {}]
  %s6 = inlined_call_operand.vmem [shape: s32[1,8,8], index: 6, kind: input, shape index: {}]
  %s7 = inlined_call_operand.vmem [shape: bf16[2,4,8,8], index: 7, kind: output, shape index: {}]
  %s8 = sld [smem:[#allocation0]]
  $region68: #{ngram_mha_nar_forward.6} parent=0
    _
  %s10 = ssub.s32 1, %s8
  %s11 = scalar_select 0, %s10, %s8
  %12 = sst [smem:[#allocation7]] %s0
  %13 = sst [smem:[#allocation8]] %s1
  loop: start=0, step=1, limit=4
  $region2: #{ngram_mha_nar_forward.6} parent=0 // loop_pre_header
    _
  $region3: #{ngram_mha_nar_forward.6} parent=0 // loop_header
    %s15 = sphi 0, %s19
    %p16 = scmp.ge.s32.totalorder %s15, 4
    %s22 = sphi 0, %s48
    %s23 = sphi 0, %s44
    %s24 = sphi 0, %s40
    %s25 = sphi 0, %s36
    %s26 = sphi 0, %s22
    %s27 = sphi 0, %s23
    %s28 = sphi 0, %s24
    %s29 = sphi 0, %s25
    %s30 = sphi 0, %s26
    %s31 = sphi 0, %s27
    %s32 = sphi 0, %s28
    %s33 = sphi 0, %s29
    %s55 = sphi 0, %s57
    %s58 = sphi 0, %s55
    %s59 = sphi 0, %s58
    %s75 = sphi 0, %s59
    %s85 = sphi 0, %s87
    %s88 = sphi 0, %s85
    %s89 = sphi 0, %s88
    %s105 = sphi 0, %s89
    %s115 = sphi 0, %s117
    %s118 = sphi 0, %s115
    %s119 = sphi 0, %s118
    %s135 = sphi 0, %s119
    %s145 = sphi 0, %s147
    %s148 = sphi 0, %s145
    %s149 = sphi 0, %s148
    %s165 = sphi 0, %s149
    %s173 = sphi 0, %s175
    %s176 = sphi 0, %s173
    %s177 = sphi 0, %s176
    %s193 = sphi 0, %s177
    %s203 = sphi 0, %s205
    %s206 = sphi 0, %s203
    %s207 = sphi 0, %s206
    %s223 = sphi 0, %s207
  $region4: #{ngram_mha_nar_forward.6} parent=0 // loop_header_branch
    %18 = sbr.rel (%p16) target = $region8
  $region5: #{ngram_mha_nar_forward.6} parent=0 // loop_body
    %s20 = ssub.s32 %s15, 1
    %s21 = ssub.s32 %s15, 2
    %s34 = sadd.s32 1, %s25
    %p35 = scmp.ge.s32.totalorder %s34, 1
    %s36 = scalar_select %p35, 0, %s34
    %s37 = sadd.s32 1, %s24
    %s38 = scalar_select %p35, %s37, %s24
    %p39 = scmp.ge.s32.totalorder %s38, 1
    %s40 = scalar_select %p39, 0, %s38
    %s41 = sadd.s32 1, %s23
    %s42 = scalar_select %p39, %s41, %s23
    %p43 = scmp.ge.s32.totalorder %s42, 1
    %s44 = scalar_select %p43, 0, %s42
    %s45 = sadd.s32 1, %s22
    %s46 = scalar_select %p43, %s45, %s22
    %p47 = scmp.ge.s32.totalorder %s46, 2
    %s48 = scalar_select %p47, 0, %s46
    %s49 = ssub.s32 %s22, %s48
    %s50 = ssub.s32 %s23, %s44
    %s51 = sor.u32 %s49, %s50
    %s52 = ssub.s32 %s24, %s40
    %s53 = sor.u32 %s51, %s52
    %p54 = scmp.eq.s32.totalorder %s53, 0
    %s56 = sadd.s32 %s55, 1
    %s57 = scalar_select %p54, %s55, %s56
    %p60 = pneg %p54
    %p61 = scmp.eq.s32.totalorder %s15, 1
    %p62 = por %p60, %p61
    %p63 = scmp.ne.s32.totalorder %s55, %s58
    %p64 = scmp.eq.s32.totalorder %s15, 0
    %p65 = por %p63, %p64
    %p66 = scmp.ne.s32.totalorder %s55, %s58
    %p67 = scmp.eq.s32.totalorder %s20, 1
    %p68 = por %p66, %p67
    %p69 = scmp.ne.s32.totalorder %s58, %s59
    %p70 = scmp.eq.s32.totalorder %s20, 0
    %p71 = por %p69, %p70
    %p72 = scmp.ne.s32.totalorder %s58, %s59
    %p73 = scmp.eq.s32.totalorder %s21, 1
    %p74 = por %p72, %p73
    %p76 = scmp.ne.s32.totalorder %s59, %s75
    %p77 = scmp.eq.s32.totalorder %s21, 0
    %p78 = por %p76, %p77
    %s79 = ssub.s32 %s22, %s48
    %s80 = ssub.s32 %s23, %s44
    %s81 = sor.u32 %s79, %s80
    %s82 = ssub.s32 %s25, %s36
    %s83 = sor.u32 %s81, %s82
    %p84 = scmp.eq.s32.totalorder %s83, 0
    %s86 = sadd.s32 %s85, 1
    %s87 = scalar_select %p84, %s85, %s86
    %p90 = pneg %p84
    %p91 = scmp.eq.s32.totalorder %s15, 1
    %p92 = por %p90, %p91
    %p93 = scmp.ne.s32.totalorder %s85, %s88
    %p94 = scmp.eq.s32.totalorder %s15, 0
    %p95 = por %p93, %p94
    %p96 = scmp.ne.s32.totalorder %s85, %s88
    %p97 = scmp.eq.s32.totalorder %s20, 1
    %p98 = por %p96, %p97
    %p99 = scmp.ne.s32.totalorder %s88, %s89
    %p100 = scmp.eq.s32.totalorder %s20, 0
    %p101 = por %p99, %p100
    %p102 = scmp.ne.s32.totalorder %s88, %s89
    %p103 = scmp.eq.s32.totalorder %s21, 1
    %p104 = por %p102, %p103
    %p106 = scmp.ne.s32.totalorder %s89, %s105
    %p107 = scmp.eq.s32.totalorder %s21, 0
    %p108 = por %p106, %p107
    %s109 = ssub.s32 %s22, %s48
    %s110 = ssub.s32 %s23, %s44
    %s111 = sor.u32 %s109, %s110
    %s112 = ssub.s32 %s25, %s36
    %s113 = sor.u32 %s111, %s112
    %p114 = scmp.eq.s32.totalorder %s113, 0
    %s116 = sadd.s32 %s115, 1
    %s117 = scalar_select %p114, %s115, %s116
    %p120 = pneg %p114
    %p121 = scmp.eq.s32.totalorder %s15, 1
    %p122 = por %p120, %p121
    %p123 = scmp.ne.s32.totalorder %s115, %s118
    %p124 = scmp.eq.s32.totalorder %s15, 0
    %p125 = por %p123, %p124
    %p126 = scmp.ne.s32.totalorder %s115, %s118
    %p127 = scmp.eq.s32.totalorder %s20, 1
    %p128 = por %p126, %p127
    %p129 = scmp.ne.s32.totalorder %s118, %s119
    %p130 = scmp.eq.s32.totalorder %s20, 0
    %p131 = por %p129, %p130
    %p132 = scmp.ne.s32.totalorder %s118, %s119
    %p133 = scmp.eq.s32.totalorder %s21, 1
    %p134 = por %p132, %p133
    %p136 = scmp.ne.s32.totalorder %s119, %s135
    %p137 = scmp.eq.s32.totalorder %s21, 0
    %p138 = por %p136, %p137
    %s139 = ssub.s32 %s22, %s48
    %s140 = ssub.s32 %s23, %s44
    %s141 = sor.u32 %s139, %s140
    %s142 = ssub.s32 %s24, %s40
    %s143 = sor.u32 %s141, %s142
    %p144 = scmp.eq.s32.totalorder %s143, 0
    %s146 = sadd.s32 %s145, 1
    %s147 = scalar_select %p144, %s145, %s146
    %p150 = pneg %p144
    %p151 = scmp.eq.s32.totalorder %s15, 1
    %p152 = por %p150, %p151
    %p153 = scmp.ne.s32.totalorder %s145, %s148
    %p154 = scmp.eq.s32.totalorder %s15, 0
    %p155 = por %p153, %p154
    %p156 = scmp.ne.s32.totalorder %s145, %s148
    %p157 = scmp.eq.s32.totalorder %s20, 1
    %p158 = por %p156, %p157
    %p159 = scmp.ne.s32.totalorder %s148, %s149
    %p160 = scmp.eq.s32.totalorder %s20, 0
    %p161 = por %p159, %p160
    %p162 = scmp.ne.s32.totalorder %s148, %s149
    %p163 = scmp.eq.s32.totalorder %s21, 1
    %p164 = por %p162, %p163
    %p166 = scmp.ne.s32.totalorder %s149, %s165
    %p167 = scmp.eq.s32.totalorder %s21, 0
    %p168 = por %p166, %p167
    %s169 = ssub.s32 %s24, %s40
    %s170 = ssub.s32 %s25, %s36
    %s171 = sor.u32 %s169, %s170
    %p172 = scmp.eq.s32.totalorder %s171, 0
    %s174 = sadd.s32 %s173, 1
    %s175 = scalar_select %p172, %s173, %s174
    %p178 = pneg %p172
    %p179 = scmp.eq.s32.totalorder %s15, 1
    %p180 = por %p178, %p179
    %p181 = scmp.ne.s32.totalorder %s173, %s176
    %p182 = scmp.eq.s32.totalorder %s15, 0
    %p183 = por %p181, %p182
    %p184 = scmp.ne.s32.totalorder %s173, %s176
    %p185 = scmp.eq.s32.totalorder %s20, 1
    %p186 = por %p184, %p185
    %p187 = scmp.ne.s32.totalorder %s176, %s177
    %p188 = scmp.eq.s32.totalorder %s20, 0
    %p189 = por %p187, %p188
    %p190 = scmp.ne.s32.totalorder %s176, %s177
    %p191 = scmp.eq.s32.totalorder %s21, 1
    %p192 = por %p190, %p191
    %p194 = scmp.ne.s32.totalorder %s177, %s193
    %p195 = scmp.eq.s32.totalorder %s21, 0
    %p196 = por %p194, %p195
    %s197 = ssub.s32 %s22, %s48
    %s198 = ssub.s32 %s23, %s44
    %s199 = sor.u32 %s197, %s198
    %s200 = ssub.s32 %s24, %s40
    %s201 = sor.u32 %s199, %s200
    %p202 = scmp.eq.s32.totalorder %s201, 0
    %s204 = sadd.s32 %s203, 1
    %s205 = scalar_select %p202, %s203, %s204
    %p208 = pneg %p202
    %p209 = scmp.eq.s32.totalorder %s15, 1
    %p210 = por %p208, %p209
    %p211 = scmp.ne.s32.totalorder %s203, %s206
    %p212 = scmp.eq.s32.totalorder %s15, 0
    %p213 = por %p211, %p212
    %p214 = scmp.ne.s32.totalorder %s203, %s206
    %p215 = scmp.eq.s32.totalorder %s20, 1
    %p216 = por %p214, %p215
    %p217 = scmp.ne.s32.totalorder %s206, %s207
    %p218 = scmp.eq.s32.totalorder %s20, 0
    %p219 = por %p217, %p218
    %p220 = scmp.ne.s32.totalorder %s206, %s207
    %p221 = scmp.eq.s32.totalorder %s21, 1
    %p222 = por %p220, %p221
    %p224 = scmp.ne.s32.totalorder %s207, %s223
    %p225 = scmp.eq.s32.totalorder %s21, 0
    %p226 = por %p224, %p225
    %p227 = scmp.le.s32.totalorder 1, %s15
    %p228 = scmp.lt.s32.totalorder %s15, 3
    %p229 = pnand %p227, %p228
    %p230 = pneg %p229
    // Predicated region
    $region9: #{ngram_mha_nar_forward.6} parent=5 // pred_check
      _
    $region10: #{ngram_mha_nar_forward.6} parent=5 // pred_check_branch
      %232 = sbr.rel (%p229) target = $region12
    $region11: #{ngram_mha_nar_forward.6} parent=5 // pred_region
      %s233 = ssub.s32 %s15, 1
      // Predicated region
      $region13: #{ngram_mha_nar_forward.6} parent=11 // pred_check
        %p234 = pneg %p189
      $region14: #{ngram_mha_nar_forward.6} parent=11 // pred_check_branch
        %236 = sbr.rel (%p234) target = $region16
      $region15: #{ngram_mha_nar_forward.6} parent=11 // pred_region
        %p237 = scmp.lt.s32.totalorder %s28, 0
        %s238 = scalar_select %p237, %s28, 0
        %p239 = scmp.lt.s32.totalorder %s29, 0
        %s240 = scalar_select %p239, %s29, 0
        %s241 = sadd.s32 %s240, %s238
        %s242 = smul.addr %s241, 8
        %s243 = scalar_lea.vmem %s6, %s242
      $region16: #{ngram_mha_nar_forward.6} parent=11 // pred_fallthru
        _
    $region12: #{ngram_mha_nar_forward.6} parent=5 // pred_fallthru
      _
    %p244 = scmp.lt.s32.totalorder %s15, 2
    // Predicated region
    $region17: #{ngram_mha_nar_forward.6} parent=5 // pred_check
      %p245 = pneg %p244
    $region18: #{ngram_mha_nar_forward.6} parent=5 // pred_check_branch
      %247 = sbr.rel (%p245) target = $region20
    $region19: #{ngram_mha_nar_forward.6} parent=5 // pred_region
      // Predicated region
      $region21: #{ngram_mha_nar_forward.6} parent=19 // pred_check
        %p248 = pneg %p65
      $region22: #{ngram_mha_nar_forward.6} parent=19 // pred_check_branch
        %250 = sbr.rel (%p248) target = $region24
      $region23: #{ngram_mha_nar_forward.6} parent=19 // pred_region
        %s251 = smul.u32 4, %s23
        %p252 = scmp.lt.s32.totalorder %s22, 1
        %s253 = scalar_select %p252, %s22, 1
        %p254 = scmp.lt.s32.totalorder %s251, 3
        %s255 = scalar_select %p254, %s251, 3
        %p256 = scmp.lt.s32.totalorder %s24, 0
        %s257 = scalar_select %p256, %s24, 0
        %s258 = sadd.s32 %s257, %s255
        %s259 = smul.addr %s253, 4
        %s260 = sadd.s32 %s258, %s259
        %s261 = smul.addr %s260, 4
        %s262 = scalar_lea.vmem %s2, %s261
        %s263 = smul.u32 4, %s23
      $region24: #{ngram_mha_nar_forward.6} parent=19 // pred_fallthru
        _
      // Predicated region
      $region25: #{ngram_mha_nar_forward.6} parent=19 // pred_check
        %p264 = pneg %p95
      $region26: #{ngram_mha_nar_forward.6} parent=19 // pred_check_branch
        %266 = sbr.rel (%p264) target = $region28
      $region27: #{ngram_mha_nar_forward.6} parent=19 // pred_region
        %s267 = smul.u32 4, %s23
        %p268 = scmp.lt.s32.totalorder %s22, 1
        %s269 = scalar_select %p268, %s22, 1
        %p270 = scmp.lt.s32.totalorder %s267, 3
        %s271 = scalar_select %p270, %s267, 3
        %p272 = scmp.lt.s32.totalorder %s25, 0
        %s273 = scalar_select %p272, %s25, 0
        %s274 = sadd.s32 %s273, %s271
        %s275 = smul.addr %s269, 4
        %s276 = sadd.s32 %s274, %s275
        %s277 = smul.addr %s276, 4
        %s278 = scalar_lea.vmem %s3, %s277
        %s279 = smul.u32 4, %s23
      $region28: #{ngram_mha_nar_forward.6} parent=19 // pred_fallthru
        _
      // Predicated region
      $region29: #{ngram_mha_nar_forward.6} parent=19 // pred_check
        %p280 = pneg %p125
      $region30: #{ngram_mha_nar_forward.6} parent=19 // pred_check_branch
        %282 = sbr.rel (%p280) target = $region32
      $region31: #{ngram_mha_nar_forward.6} parent=19 // pred_region
        %s283 = smul.u32 4, %s23
        %p284 = scmp.lt.s32.totalorder %s22, 1
        %s285 = scalar_select %p284, %s22, 1
        %p286 = scmp.lt.s32.totalorder %s283, 3
        %s287 = scalar_select %p286, %s283, 3
        %p288 = scmp.lt.s32.totalorder %s25, 0
        %s289 = scalar_select %p288, %s25, 0
        %s290 = sadd.s32 %s289, %s287
        %s291 = smul.addr %s285, 4
        %s292 = sadd.s32 %s290, %s291
        %s293 = smul.addr %s292, 4
        %s294 = scalar_lea.vmem %s4, %s293
        %s295 = smul.u32 4, %s23
      $region32: #{ngram_mha_nar_forward.6} parent=19 // pred_fallthru
        _
      // Predicated region
      $region33: #{ngram_mha_nar_forward.6} parent=19 // pred_check
        %p296 = pneg %p155
      $region34: #{ngram_mha_nar_forward.6} parent=19 // pred_check_branch
        %298 = sbr.rel (%p296) target = $region36
      $region35: #{ngram_mha_nar_forward.6} parent=19 // pred_region
        %s299 = smul.u32 4, %s23
        %p300 = scmp.lt.s32.totalorder %s22, 1
        %s301 = scalar_select %p300, %s22, 1
        %p302 = scmp.lt.s32.totalorder %s299, 3
        %s303 = scalar_select %p302, %s299, 3
        %p304 = scmp.lt.s32.totalorder %s24, 0
        %s305 = scalar_select %p304, %s24, 0
        %s306 = sadd.s32 %s305, %s303
        %s307 = smul.addr %s301, 4
        %s308 = sadd.s32 %s306, %s307
        %s309 = smul.addr %s308, 4
        %s310 = scalar_lea.vmem %s5, %s309
        %s311 = smul.u32 4, %s23
      $region36: #{ngram_mha_nar_forward.6} parent=19 // pred_fallthru
        _
    $region20: #{ngram_mha_nar_forward.6} parent=5 // pred_fallthru
      _
    %p312 = scmp.le.s32.totalorder 1, %s15
    %p313 = scmp.lt.s32.totalorder %s15, 3
    %p314 = pnand %p312, %p313
    %p315 = pneg %p314
    // Predicated region
    $region37: #{ngram_mha_nar_forward.6} parent=5 // pred_check
      _
    $region38: #{ngram_mha_nar_forward.6} parent=5 // pred_check_branch
      %317 = sbr.rel (%p314) target = $region40
    $region39: #{ngram_mha_nar_forward.6} parent=5 // pred_region
      %s318 = ssub.s32 %s15, 1
      %s319 = smul.u32 4, %s27
      %p320 = scmp.lt.s32.totalorder %s26, 1
      %s321 = scalar_select %p320, %s26, 1
      %p322 = scmp.lt.s32.totalorder %s319, 3
      %s323 = scalar_select %p322, %s319, 3
      %p324 = scmp.lt.s32.totalorder %s28, 0
      %s325 = scalar_select %p324, %s28, 0
      %s326 = sadd.s32 %s325, %s323
      %s327 = smul.addr %s321, 4
      %s328 = sadd.s32 %s326, %s327
      %s329 = smul.addr %s328, 4
      %s330 = scalar_lea.vmem %s2, %s329
      %p331 = pneg %p71
      %p332 = pneg %p68
      %s333 = smul.u32 4, %s27
      %p334 = scmp.lt.s32.totalorder %s26, 1
      %s335 = scalar_select %p334, %s26, 1
      %p336 = scmp.lt.s32.totalorder %s333, 3
      %s337 = scalar_select %p336, %s333, 3
      %p338 = scmp.lt.s32.totalorder %s29, 0
      %s339 = scalar_select %p338, %s29, 0
      %s340 = sadd.s32 %s339, %s337
      %s341 = smul.addr %s335, 4
      %s342 = sadd.s32 %s340, %s341
      %s343 = smul.addr %s342, 4
      %s344 = scalar_lea.vmem %s3, %s343
      %p345 = pneg %p101
      %p346 = pneg %p98
      %s347 = smul.u32 4, %s27
      %p348 = scmp.lt.s32.totalorder %s26, 1
      %s349 = scalar_select %p348, %s26, 1
      %p350 = scmp.lt.s32.totalorder %s347, 3
      %s351 = scalar_select %p350, %s347, 3
      %p352 = scmp.lt.s32.totalorder %s29, 0
      %s353 = scalar_select %p352, %s29, 0
      %s354 = sadd.s32 %s353, %s351
      %s355 = smul.addr %s349, 4
      %s356 = sadd.s32 %s354, %s355
      %s357 = smul.addr %s356, 4
      %s358 = scalar_lea.vmem %s4, %s357
      %p359 = pneg %p131
      %p360 = pneg %p128
      %s361 = smul.u32 4, %s27
      %p362 = scmp.lt.s32.totalorder %s26, 1
      %s363 = scalar_select %p362, %s26, 1
      %p364 = scmp.lt.s32.totalorder %s361, 3
      %s365 = scalar_select %p364, %s361, 3
      %p366 = scmp.lt.s32.totalorder %s28, 0
      %s367 = scalar_select %p366, %s28, 0
      %s368 = sadd.s32 %s367, %s365
      %s369 = smul.addr %s363, 4
      %s370 = sadd.s32 %s368, %s369
      %s371 = smul.addr %s370, 4
      %s372 = scalar_lea.vmem %s5, %s371
      %p373 = pneg %p161
      %p374 = pneg %p158
      %p375 = scmp.lt.s32.totalorder %s28, 0
      %s376 = scalar_select %p375, %s28, 0
      %p377 = scmp.lt.s32.totalorder %s29, 0
      %s378 = scalar_select %p377, %s29, 0
      %s379 = sadd.s32 %s378, %s376
      %s380 = smul.addr %s379, 8
      %s381 = scalar_lea.vmem %s6, %s380
      %p382 = pneg %p189
      %p383 = pneg %p186
      %p384 = pneg %p219
      %p385 = pneg %p216
      %s386 = smul.u32 4, %s27
      %p387 = scmp.lt.s32.totalorder %s26, 1
      %s388 = scalar_select %p387, %s26, 1
      %p389 = scmp.lt.s32.totalorder %s386, 3
      %s390 = scalar_select %p389, %s386, 3
      %p391 = scmp.lt.s32.totalorder %s28, 0
      %s392 = scalar_select %p391, %s28, 0
      %s393 = sadd.s32 %s392, %s390
      %s394 = smul.addr %s388, 4
      %s395 = sadd.s32 %s393, %s394
      %s396 = smul.addr %s395, 4
      %s397 = scalar_lea.vmem %s7, %s396
      %s398 = smul.u32 4, %s27
      %p399 = scmp.lt.s32.totalorder %s26, 1
      %s400 = scalar_select %p399, %s26, 1
      %p401 = scmp.lt.s32.totalorder %s398, 3
      %s402 = scalar_select %p401, %s398, 3
      %p403 = scmp.lt.s32.totalorder %s28, 0
      %s404 = scalar_select %p403, %s28, 0
      %s405 = sadd.s32 %s404, %s402
      %s406 = smul.addr %s400, 4
      %s407 = sadd.s32 %s405, %s406
      %s408 = smul.addr %s407, 4
      %s409 = scalar_lea.vmem %s2, %s408
      %s410 = smul.u32 4, %s27
      %s411 = smul.u32 4, %s27
      %p412 = scmp.lt.s32.totalorder %s26, 1
      %s413 = scalar_select %p412, %s26, 1
      %p414 = scmp.lt.s32.totalorder %s411, 3
      %s415 = scalar_select %p414, %s411, 3
      %p416 = scmp.lt.s32.totalorder %s29, 0
      %s417 = scalar_select %p416, %s29, 0
      %s418 = sadd.s32 %s417, %s415
      %s419 = smul.addr %s413, 4
      %s420 = sadd.s32 %s418, %s419
      %s421 = smul.addr %s420, 4
      %s422 = scalar_lea.vmem %s3, %s421
      %s423 = smul.u32 4, %s27
      %s424 = smul.u32 4, %s27
      %p425 = scmp.lt.s32.totalorder %s26, 1
      %s426 = scalar_select %p425, %s26, 1
      %p427 = scmp.lt.s32.totalorder %s424, 3
      %s428 = scalar_select %p427, %s424, 3
      %p429 = scmp.lt.s32.totalorder %s29, 0
      %s430 = scalar_select %p429, %s29, 0
      %s431 = sadd.s32 %s430, %s428
      %s432 = smul.addr %s426, 4
      %s433 = sadd.s32 %s431, %s432
      %s434 = smul.addr %s433, 4
      %s435 = scalar_lea.vmem %s4, %s434
      %s436 = smul.u32 4, %s27
      %s437 = smul.u32 4, %s27
      %p438 = scmp.lt.s32.totalorder %s26, 1
      %s439 = scalar_select %p438, %s26, 1
      %p440 = scmp.lt.s32.totalorder %s437, 3
      %s441 = scalar_select %p440, %s437, 3
      %p442 = scmp.lt.s32.totalorder %s28, 0
      %s443 = scalar_select %p442, %s28, 0
      %s444 = sadd.s32 %s443, %s441
      %s445 = smul.addr %s439, 4
      %s446 = sadd.s32 %s444, %s445
      %s447 = smul.addr %s446, 4
      %s448 = scalar_lea.vmem %s5, %s447
      %s449 = smul.u32 4, %s27
      %p450 = scmp.lt.s32.totalorder %s28, 0
      %s451 = scalar_select %p450, %s28, 0
      %p452 = scmp.lt.s32.totalorder %s29, 0
      %s453 = scalar_select %p452, %s29, 0
      %s454 = sadd.s32 %s453, %s451
      %s455 = smul.addr %s454, 8
      %s456 = scalar_lea.vmem %s6, %s455
      %s457 = smul.u32 4, %s27
      %p458 = scmp.lt.s32.totalorder %s26, 1
      %s459 = scalar_select %p458, %s26, 1
      %p460 = scmp.lt.s32.totalorder %s457, 3
      %s461 = scalar_select %p460, %s457, 3
      %p462 = scmp.lt.s32.totalorder %s28, 0
      %s463 = scalar_select %p462, %s28, 0
      %s464 = sadd.s32 %s463, %s461
      %s465 = smul.addr %s459, 4
      %s466 = sadd.s32 %s464, %s465
      %s467 = smul.addr %s466, 4
      %s468 = scalar_lea.vmem %s7, %s467
      %s469 = smul.u32 4, %s27
      %p471 = scmp.eq.s32.totalorder %s29, 0
      // Predicated region
      $region41: #{ngram_mha_nar_forward.6} parent=39 // pred_check
        %p472 = pneg %p471
      $region42: #{ngram_mha_nar_forward.6} parent=39 // pred_check_branch
        %474 = sbr.rel (%p472) target = $region44
      $region43: #{ngram_mha_nar_forward.6} parent=39 // pred_region
        %vm475 = vcmask 7168
        %476 = vst.msk [vmem:[#allocation2] sm:$0xff] %vm475, -inf
        %477 = vst.msk [vmem:[#allocation2 + $0x8] sm:$0xff] %vm475, -inf
        %478 = vst.msk [vmem:[#allocation2 + $0x10] sm:$0xff] %vm475, -inf
        %479 = vst.msk [vmem:[#allocation2 + $0x18] sm:$0xff] %vm475, -inf
        %480 = vst.msk [vmem:[#allocation3] sm:$0xff] %vm475, 0.0
        %481 = vst.msk [vmem:[#allocation3 + $0x8] sm:$0xff] %vm475, 0.0
        %482 = vst.msk [vmem:[#allocation3 + $0x10] sm:$0xff] %vm475, 0.0
        %483 = vst.msk [vmem:[#allocation3 + $0x18] sm:$0xff] %vm475, 0.0
        %vm484 = vcmask 64512
        %485 = vst.msk [vmem:[#allocation4] sm:$0xff] %vm484, 0.0
        %486 = vst.msk [vmem:[#allocation4 + $0x8] sm:$0xff] %vm484, 0.0
        %487 = vst.msk [vmem:[#allocation4 + $0x10] sm:$0xff] %vm484, 0.0
        %488 = vst.msk [vmem:[#allocation4 + $0x18] sm:$0xff] %vm484, 0.0
      $region44: #{ngram_mha_nar_forward.6} parent=39 // pred_fallthru
        _
      %v489 = vld [vmem:[%s409] sm:$0xf]
      %v490 = vld [vmem:[%s409 + $0x4] sm:$0xf]
      %v491 = vld [vmem:[%s409 + $0x8] sm:$0xf]
      %v492 = vld [vmem:[%s409 + $0xc] sm:$0xf]
      %v493 = vld [vmem:[%s422] sm:$0xf]
      %v494 = vld [vmem:[%s422 + $0x4] sm:$0xf]
      %v495 = vld [vmem:[%s422 + $0x8] sm:$0xf]
      %v496 = vld [vmem:[%s422 + $0xc] sm:$0xf]
      %v497 = vld [vmem:[%s435] sm:$0xf]
      %v498 = vld [vmem:[%s435 + $0x4] sm:$0xf]
      %v499 = vld [vmem:[%s435 + $0x8] sm:$0xf]
      %v500 = vld [vmem:[%s435 + $0xc] sm:$0xf]
      %v501 = vld [vmem:[%s448] sm:$0xf]
      %v502 = vld [vmem:[%s448 + $0x4] sm:$0xf]
      %v503 = vld [vmem:[%s448 + $0x8] sm:$0xf]
      %v504 = vld [vmem:[%s448 + $0xc] sm:$0xf]
      %v505 = vunpack.c.l.bf16 %v501
      %v506 = vunpack.c.l.bf16 %v502
      %v507 = vunpack.c.l.bf16 %v503
      %v508 = vunpack.c.l.bf16 %v504
      %v509 = vld [vmem:[%s456] sm:$0xff]
      %s510 = sadd.s32 %s28, %s29
      %s511 = sld [smem:[#allocation7 + %s510]]
      %s512 = sld [smem:[#allocation8 + %s510]]
      %v513 = vlaneseq
      %v514 = vand.u32 %v513, 127
      %vm515 = vcmask 64512
      %516 = vst.msk [vmem:[#allocation5] sm:$0xff] %vm515, 0.0
      %517 = vst.msk [vmem:[#allocation5 + $0x8] sm:$0xff] %vm515, 0.0
      %518 = vst.msk [vmem:[#allocation5 + $0x10] sm:$0xff] %vm515, 0.0
      %519 = vst.msk [vmem:[#allocation5 + $0x18] sm:$0xff] %vm515, 0.0
      %s520 = sadd.s32 %s512, 1
      // While loop
      $region45: #{ngram_mha_nar_forward.6} parent=39 // loop_pre_header
        _
      $region46: #{ngram_mha_nar_forward.6} parent=39 // loop_header
        %s522 = sphi %s511, %s524
        %p523 = scmp.ge.s32.totalorder %s522, %s520
      $region47: #{ngram_mha_nar_forward.6} parent=39 // loop_header_branch
        %526 = sbr.rel (%p523) target = $region51
      $region48: #{ngram_mha_nar_forward.6} parent=39 // loop_body
        %v527 = vstv %s522
        %vm528 = vcmp.eq.s32.totalorder %v514, %v527
        %v529 = vsel %vm528, %v505, 0.0
        %v530 = vsel %vm528, %v506, 0.0
        %v531 = vsel %vm528, %v507, 0.0
        %v532 = vsel %vm528, %v508, 0.0
        %vm533 = vcmask 261120
        %v534 = vsel %vm533, %v529, 0.0
        %535 = vadd.xlane.f32.xlu0 %v534
        %v536 = vpop.xlane.xlu0 %535
        %v537 = vsel %vm533, %v530, 0.0
        %538 = vadd.xlane.f32.xlu0 %v537
        %v539 = vpop.xlane.xlu0 %538
        %v540 = vsel %vm533, %v531, 0.0
        %541 = vadd.xlane.f32.xlu0 %v540
        %v542 = vpop.xlane.xlu0 %541
        %v543 = vsel %vm533, %v532, 0.0
        %544 = vadd.xlane.f32.xlu0 %v543
        %v545 = vpop.xlane.xlu0 %544
        %vm546 = vcmp.eq.s32.totalorder %v509, %v527
        %v547 = vld [vmem:[#allocation5] sm:$0xff]
        %v548 = vld [vmem:[#allocation5 + $0x8] sm:$0xff]
        %v549 = vld [vmem:[#allocation5 + $0x10] sm:$0xff]
        %v550 = vld [vmem:[#allocation5 + $0x18] sm:$0xff]
        %v551 = vsel %vm546, 1, 0
        %vm552 = vcmp.eq.s32.totalorder %v551, 1
        %v553 = vsel %vm552, %v536, %v547
        %v554 = vsel %vm552, %v539, %v548
        %v555 = vsel %vm552, %v542, %v549
        %v556 = vsel %vm552, %v545, %v550
        %557 = vst.msk [vmem:[#allocation5] sm:$0xff] %vm515, %v553
        %558 = vst.msk [vmem:[#allocation5 + $0x8] sm:$0xff] %vm515, %v554
        %559 = vst.msk [vmem:[#allocation5 + $0x10] sm:$0xff] %vm515, %v555
        %560 = vst.msk [vmem:[#allocation5 + $0x18] sm:$0xff] %vm515, %v556
      $region49: #{ngram_mha_nar_forward.6} parent=39 // loop_footer
        %s524 = sadd.s32 %s522, 1
      $region50: #{ngram_mha_nar_forward.6} parent=39 // loop_footer_branch
        %521 = sbr.rel target = $region46
      $region51: #{ngram_mha_nar_forward.6} parent=39 // loop_exit
        _
      %v561 = vld [vmem:[#allocation5] sm:$0xff]
      %v562 = vld [vmem:[#allocation5 + $0x8] sm:$0xff]
      %v563 = vld [vmem:[#allocation5 + $0x10] sm:$0xff]
      %v564 = vld [vmem:[#allocation5 + $0x18] sm:$0xff]
      %v566 = vsel %vm515, %v489, 0
      %v569 = vsel %vm515, %v493, 0
      %571 = vmatprep.subr.bf16.mxu0 0
      %572 = vmatpush1.bf16.xpose.msra.mxu0 %v569
      %573 = vmatprep.subr.bf16.mxu0 0
      %574 = vmatpush1.bf16.xpose.msra.mxu0 0
      %575 = vmatprep.subr.bf16.mxu0 0
      %576 = vmatpush1.bf16.xpose.msra.mxu0 0
      %577 = vmatprep.subr.bf16.mxu0 0
      %578 = vmatpush1.bf16.xpose.msra.mxu0 0
      %579 = vmatprep.subr.bf16.mxu0 0
      %580 = vmatpush1.bf16.xpose.msra.mxu0 0
      %581 = vmatprep.subr.bf16.mxu0 0
      %582 = vmatpush1.bf16.xpose.msra.mxu0 0
      %583 = vmatprep.subr.bf16.mxu0 0
      %584 = vmatpush1.bf16.xpose.msra.mxu0 0
      %585 = vmatprep.subr.bf16.mxu0 0
      %586 = vmatpush1.bf16.xpose.msra.mxu0 0
      %587 = vmatprep.subr.bf16.mxu0 0
      %588 = vmatpush1.bf16.xpose.msra.mxu0 0
      %589 = vmatprep.subr.bf16.mxu0 0
      %590 = vmatpush1.bf16.xpose.msra.mxu0 0
      %591 = vmatprep.subr.bf16.mxu0 0
      %592 = vmatpush1.bf16.xpose.msra.mxu0 0
      %593 = vmatprep.subr.bf16.mxu0 0
      %594 = vmatpush1.bf16.xpose.msra.mxu0 0
      %595 = vmatprep.subr.bf16.mxu0 0
      %596 = vmatpush1.bf16.xpose.msra.mxu0 0
      %597 = vmatprep.subr.bf16.mxu0 0
      %598 = vmatpush1.bf16.xpose.msra.mxu0 0
      %599 = vmatprep.subr.bf16.mxu0 0
      %600 = vmatpush1.bf16.xpose.msra.mxu0 0
      %601 = vmatprep.subr.bf16.mxu0 0
      %602 = vmatpush1.bf16.xpose.msra.mxu0 0
      %603 = vmatprep.mubr.bf16.mxu0 0
      %604 = vmatmul.mubr.bf16.gmra.mrb[0].mxu0 %v566
      %v605 = vpop.f32.mrb[0].mxu0
      %v606 = vadd.f32 %v561, %v605
      %v607 = vpop.f32.mrb[0].mxu0
      %v608 = vpop.f32.mrb[0].mxu0
      %v609 = vpop.f32.mrb[0].mxu0
      %610 = vdwg.mxu0
      %v612 = vsel %vm515, %v490, 0
      %v615 = vsel %vm515, %v494, 0
      %617 = vmatprep.subr.bf16.mxu0 0
      %618 = vmatpush1.bf16.xpose.msra.mxu0 %v615
      %619 = vmatprep.subr.bf16.mxu0 0
      %620 = vmatpush1.bf16.xpose.msra.mxu0 0
      %621 = vmatprep.subr.bf16.mxu0 0
      %622 = vmatpush1.bf16.xpose.msra.mxu0 0
      %623 = vmatprep.subr.bf16.mxu0 0
      %624 = vmatpush1.bf16.xpose.msra.mxu0 0
      %625 = vmatprep.subr.bf16.mxu0 0
      %626 = vmatpush1.bf16.xpose.msra.mxu0 0
      %627 = vmatprep.subr.bf16.mxu0 0
      %628 = vmatpush1.bf16.xpose.msra.mxu0 0
      %629 = vmatprep.subr.bf16.mxu0 0
      %630 = vmatpush1.bf16.xpose.msra.mxu0 0
      %631 = vmatprep.subr.bf16.mxu0 0
      %632 = vmatpush1.bf16.xpose.msra.mxu0 0
      %633 = vmatprep.subr.bf16.mxu0 0
      %634 = vmatpush1.bf16.xpose.msra.mxu0 0
      %635 = vmatprep.subr.bf16.mxu0 0
      %636 = vmatpush1.bf16.xpose.msra.mxu0 0
      %637 = vmatprep.subr.bf16.mxu0 0
      %638 = vmatpush1.bf16.xpose.msra.mxu0 0
      %639 = vmatprep.subr.bf16.mxu0 0
      %640 = vmatpush1.bf16.xpose.msra.mxu0 0
      %641 = vmatprep.subr.bf16.mxu0 0
      %642 = vmatpush1.bf16.xpose.msra.mxu0 0
      %643 = vmatprep.subr.bf16.mxu0 0
      %644 = vmatpush1.bf16.xpose.msra.mxu0 0
      %645 = vmatprep.subr.bf16.mxu0 0
      %646 = vmatpush1.bf16.xpose.msra.mxu0 0
      %647 = vmatprep.subr.bf16.mxu0 0
      %648 = vmatpush1.bf16.xpose.msra.mxu0 0
      %649 = vmatprep.mubr.bf16.mxu0 0
      %650 = vmatmul.mubr.bf16.gmra.mrb[0].mxu0 %v612
      %v651 = vpop.f32.mrb[0].mxu0
      %v652 = vadd.f32 %v562, %v651
      %v653 = vpop.f32.mrb[0].mxu0
      %v654 = vpop.f32.mrb[0].mxu0
      %v655 = vpop.f32.mrb[0].mxu0
      %656 = vdwg.mxu0
      %v658 = vsel %vm515, %v491, 0
      %v661 = vsel %vm515, %v495, 0
      %663 = vmatprep.subr.bf16.mxu0 0
      %664 = vmatpush1.bf16.xpose.msra.mxu0 %v661
      %665 = vmatprep.subr.bf16.mxu0 0
      %666 = vmatpush1.bf16.xpose.msra.mxu0 0
      %667 = vmatprep.subr.bf16.mxu0 0
      %668 = vmatpush1.bf16.xpose.msra.mxu0 0
      %669 = vmatprep.subr.bf16.mxu0 0
      %670 = vmatpush1.bf16.xpose.msra.mxu0 0
      %671 = vmatprep.subr.bf16.mxu0 0
      %672 = vmatpush1.bf16.xpose.msra.mxu0 0
      %673 = vmatprep.subr.bf16.mxu0 0
      %674 = vmatpush1.bf16.xpose.msra.mxu0 0
      %675 = vmatprep.subr.bf16.mxu0 0
      %676 = vmatpush1.bf16.xpose.msra.mxu0 0
      %677 = vmatprep.subr.bf16.mxu0 0
      %678 = vmatpush1.bf16.xpose.msra.mxu0 0
      %679 = vmatprep.subr.bf16.mxu0 0
      %680 = vmatpush1.bf16.xpose.msra.mxu0 0
      %681 = vmatprep.subr.bf16.mxu0 0
      %682 = vmatpush1.bf16.xpose.msra.mxu0 0
      %683 = vmatprep.subr.bf16.mxu0 0
      %684 = vmatpush1.bf16.xpose.msra.mxu0 0
      %685 = vmatprep.subr.bf16.mxu0 0
      %686 = vmatpush1.bf16.xpose.msra.mxu0 0
      %687 = vmatprep.subr.bf16.mxu0 0
      %688 = vmatpush1.bf16.xpose.msra.mxu0 0
      %689 = vmatprep.subr.bf16.mxu0 0
      %690 = vmatpush1.bf16.xpose.msra.mxu0 0
      %691 = vmatprep.subr.bf16.mxu0 0
      %692 = vmatpush1.bf16.xpose.msra.mxu0 0
      %693 = vmatprep.subr.bf16.mxu0 0
      %694 = vmatpush1.bf16.xpose.msra.mxu0 0
      %695 = vmatprep.mubr.bf16.mxu0 0
      %696 = vmatmul.mubr.bf16.gmra.mrb[0].mxu0 %v658
      %v697 = vpop.f32.mrb[0].mxu0
      %v698 = vadd.f32 %v563, %v697
      %v699 = vpop.f32.mrb[0].mxu0
      %v700 = vpop.f32.mrb[0].mxu0
      %v701 = vpop.f32.mrb[0].mxu0
      %702 = vdwg.mxu0
      %v704 = vsel %vm515, %v492, 0
      %v707 = vsel %vm515, %v496, 0
      %709 = vmatprep.subr.bf16.mxu0 0
      %710 = vmatpush1.bf16.xpose.msra.mxu0 %v707
      %711 = vmatprep.subr.bf16.mxu0 0
      %712 = vmatpush1.bf16.xpose.msra.mxu0 0
      %713 = vmatprep.subr.bf16.mxu0 0
      %714 = vmatpush1.bf16.xpose.msra.mxu0 0
      %715 = vmatprep.subr.bf16.mxu0 0
      %716 = vmatpush1.bf16.xpose.msra.mxu0 0
      %717 = vmatprep.subr.bf16.mxu0 0
      %718 = vmatpush1.bf16.xpose.msra.mxu0 0
      %719 = vmatprep.subr.bf16.mxu0 0
      %720 = vmatpush1.bf16.xpose.msra.mxu0 0
      %721 = vmatprep.subr.bf16.mxu0 0
      %722 = vmatpush1.bf16.xpose.msra.mxu0 0
      %723 = vmatprep.subr.bf16.mxu0 0
      %724 = vmatpush1.bf16.xpose.msra.mxu0 0
      %725 = vmatprep.subr.bf16.mxu0 0
      %726 = vmatpush1.bf16.xpose.msra.mxu0 0
      %727 = vmatprep.subr.bf16.mxu0 0
      %728 = vmatpush1.bf16.xpose.msra.mxu0 0
      %729 = vmatprep.subr.bf16.mxu0 0
      %730 = vmatpush1.bf16.xpose.msra.mxu0 0
      %731 = vmatprep.subr.bf16.mxu0 0
      %732 = vmatpush1.bf16.xpose.msra.mxu0 0
      %733 = vmatprep.subr.bf16.mxu0 0
      %734 = vmatpush1.bf16.xpose.msra.mxu0 0
      %735 = vmatprep.subr.bf16.mxu0 0
      %736 = vmatpush1.bf16.xpose.msra.mxu0 0
      %737 = vmatprep.subr.bf16.mxu0 0
      %738 = vmatpush1.bf16.xpose.msra.mxu0 0
      %739 = vmatprep.subr.bf16.mxu0 0
      %740 = vmatpush1.bf16.xpose.msra.mxu0 0
      %741 = vmatprep.mubr.bf16.mxu0 0
      %742 = vmatmul.mubr.bf16.gmra.mrb[0].mxu0 %v704
      %v743 = vpop.f32.mrb[0].mxu0
      %v744 = vadd.f32 %v564, %v743
      %v745 = vpop.f32.mrb[0].mxu0
      %v746 = vpop.f32.mrb[0].mxu0
      %v747 = vpop.f32.mrb[0].mxu0
      %748 = vdwg.mxu0
      %v749 = vld [vmem:[#allocation2] sm:$0xff]
      %v750 = vld [vmem:[#allocation2 + $0x8] sm:$0xff]
      %v751 = vld [vmem:[#allocation2 + $0x10] sm:$0xff]
      %v752 = vld [vmem:[#allocation2 + $0x18] sm:$0xff]
      %v753 = vsel %vm515, %v606, -inf
      %754 = vmax.xlane.f32.xlu0 %v753
      %v755 = vpop.xlane.xlu0 %754
      %v756 = vsel %vm515, %v652, -inf
      %757 = vmax.xlane.f32.xlu0 %v756
      %v758 = vpop.xlane.xlu0 %757
      %v759 = vsel %vm515, %v698, -inf
      %760 = vmax.xlane.f32.xlu0 %v759
      %v761 = vpop.xlane.xlu0 %760
      %v762 = vsel %vm515, %v744, -inf
      %763 = vmax.xlane.f32.xlu0 %v762
      %v764 = vpop.xlane.xlu0 %763
      %v765 = vmax.f32 %v749, %v755
      %v766 = vmax.f32 %v750, %v758
      %v767 = vmax.f32 %v751, %v761
      %v768 = vmax.f32 %v752, %v764
      %v769 = vsub.f32 %v749, %v765
      %v770 = vsub.f32 %v750, %v766
      %v771 = vsub.f32 %v751, %v767
      %v772 = vsub.f32 %v752, %v768
      %v773 = vmul.f32 %v769, 1.442695
      %v774 = vpow.pop %v773
      %v775 = vmul.f32 %v770, 1.442695
      %v776 = vpow.pop %v775
      %v777 = vmul.f32 %v771, 1.442695
      %v778 = vpow.pop %v777
      %v779 = vmul.f32 %v772, 1.442695
      %v780 = vpow.pop %v779
      %782 = vset.pattern.permute.xlu0 0
      %783 = vperm.xlu0 %782, %v765
      %v784 = vpop.permute.xlu0 %783
      %787 = vset.pattern.permute.xlu0 0
      %788 = vperm.xlu0 %787, %v766
      %v789 = vpop.permute.xlu0 %788
      %792 = vset.pattern.permute.xlu0 0
      %793 = vperm.xlu0 %792, %v767
      %v794 = vpop.permute.xlu0 %793
      %797 = vset.pattern.permute.xlu0 0
      %798 = vperm.xlu0 %797, %v768
      %v799 = vpop.permute.xlu0 %798
      %v801 = vsub.f32 %v606, %v784
      %v802 = vsub.f32 %v652, %v789
      %v803 = vsub.f32 %v698, %v794
      %v804 = vsub.f32 %v744, %v799
      %v805 = vmul.f32 %v801, 1.442695
      %v806 = vpow.pop %v805
      %v807 = vmul.f32 %v802, 1.442695
      %v808 = vpow.pop %v807
      %v809 = vmul.f32 %v803, 1.442695
      %v810 = vpow.pop %v809
      %v811 = vmul.f32 %v804, 1.442695
      %v812 = vpow.pop %v811
      %v813 = vld [vmem:[#allocation3] sm:$0xff]
      %v814 = vld [vmem:[#allocation3 + $0x8] sm:$0xff]
      %v815 = vld [vmem:[#allocation3 + $0x10] sm:$0xff]
      %v816 = vld [vmem:[#allocation3 + $0x18] sm:$0xff]
      %v817 = vmul.f32 %v774, %v813
      %v818 = vmul.f32 %v776, %v814
      %v819 = vmul.f32 %v778, %v815
      %v820 = vmul.f32 %v780, %v816
      %v821 = vsel %vm515, %v806, 0.0
      %822 = vadd.xlane.f32.xlu0 %v821
      %v823 = vpop.xlane.xlu0 %822
      %v824 = vsel %vm515, %v808, 0.0
      %825 = vadd.xlane.f32.xlu0 %v824
      %v826 = vpop.xlane.xlu0 %825
      %v827 = vsel %vm515, %v810, 0.0
      %828 = vadd.xlane.f32.xlu0 %v827
      %v829 = vpop.xlane.xlu0 %828
      %v830 = vsel %vm515, %v812, 0.0
      %831 = vadd.xlane.f32.xlu0 %v830
      %v832 = vpop.xlane.xlu0 %831
      %v833 = vadd.f32 %v817, %v823
      %v834 = vadd.f32 %v818, %v826
      %v835 = vadd.f32 %v819, %v829
      %v836 = vadd.f32 %v820, %v832
      %vm837 = vcmask 7168
      %838 = vst.msk [vmem:[#allocation3] sm:$0xff] %vm837, %v833
      %839 = vst.msk [vmem:[#allocation3 + $0x8] sm:$0xff] %vm837, %v834
      %840 = vst.msk [vmem:[#allocation3 + $0x10] sm:$0xff] %vm837, %v835
      %841 = vst.msk [vmem:[#allocation3 + $0x18] sm:$0xff] %vm837, %v836
      %v842 = vld [vmem:[#allocation4] sm:$0xff]
      %v843 = vld [vmem:[#allocation4 + $0x8] sm:$0xff]
      %v844 = vld [vmem:[#allocation4 + $0x10] sm:$0xff]
      %v845 = vld [vmem:[#allocation4 + $0x18] sm:$0xff]
      %847 = vset.pattern.permute.xlu0 0
      %848 = vperm.xlu0 %847, %v774
      %v849 = vpop.permute.xlu0 %848
      %852 = vset.pattern.permute.xlu0 0
      %853 = vperm.xlu0 %852, %v776
      %v854 = vpop.permute.xlu0 %853
      %857 = vset.pattern.permute.xlu0 0
      %858 = vperm.xlu0 %857, %v778
      %v859 = vpop.permute.xlu0 %858
      %862 = vset.pattern.permute.xlu0 0
      %863 = vperm.xlu0 %862, %v780
      %v864 = vpop.permute.xlu0 %863
      %v866 = vmul.f32 %v849, %v842
      %v867 = vmul.f32 %v854, %v843
      %v868 = vmul.f32 %v859, %v844
      %v869 = vmul.f32 %v864, %v845
      %v870 = vpack.c.bf16 %v806, %v806
      %v871 = vpack.c.bf16 %v808, %v808
      %v872 = vpack.c.bf16 %v810, %v810
      %v873 = vpack.c.bf16 %v812, %v812
      %v875 = vsel %vm515, %v870, 0
      %vm877 = vcmask 1043456
      %v879 = vsel %vm877, %v497, 0
      %881 = vmatprep.subr.bf16.mxu0 0
      %882 = vmatpush1.bf16.msra.mxu0 %v879
      %883 = vmatprep.subr.bf16.mxu0 0
      %884 = vmatpush1.bf16.msra.mxu0 0
      %885 = vmatprep.subr.bf16.mxu0 0
      %886 = vmatpush1.bf16.msra.mxu0 0
      %887 = vmatprep.subr.bf16.mxu0 0
      %888 = vmatpush1.bf16.msra.mxu0 0
      %889 = vmatprep.subr.bf16.mxu0 0
      %890 = vmatpush1.bf16.msra.mxu0 0
      %891 = vmatprep.subr.bf16.mxu0 0
      %892 = vmatpush1.bf16.msra.mxu0 0
      %893 = vmatprep.subr.bf16.mxu0 0
      %894 = vmatpush1.bf16.msra.mxu0 0
      %895 = vmatprep.subr.bf16.mxu0 0
      %896 = vmatpush1.bf16.msra.mxu0 0
      %897 = vmatprep.subr.bf16.mxu0 0
      %898 = vmatpush1.bf16.msra.mxu0 0
      %899 = vmatprep.subr.bf16.mxu0 0
      %900 = vmatpush1.bf16.msra.mxu0 0
      %901 = vmatprep.subr.bf16.mxu0 0
      %902 = vmatpush1.bf16.msra.mxu0 0
      %903 = vmatprep.subr.bf16.mxu0 0
      %904 = vmatpush1.bf16.msra.mxu0 0
      %905 = vmatprep.subr.bf16.mxu0 0
      %906 = vmatpush1.bf16.msra.mxu0 0
      %907 = vmatprep.subr.bf16.mxu0 0
      %908 = vmatpush1.bf16.msra.mxu0 0
      %909 = vmatprep.subr.bf16.mxu0 0
      %910 = vmatpush1.bf16.msra.mxu0 0
      %911 = vmatprep.subr.bf16.mxu0 0
      %912 = vmatpush1.bf16.msra.mxu0 0
      %913 = vmatprep.mubr.bf16.mxu0 0
      %914 = vmatmul.mubr.bf16.gmra.mrb[0].mxu0 %v875
      %v915 = vpop.f32.mrb[0].mxu0
      %v916 = vadd.f32 0.0, %v915
      %v917 = vpop.f32.mrb[0].mxu0
      %v918 = vpop.f32.mrb[0].mxu0
      %v919 = vpop.f32.mrb[0].mxu0
      %920 = vdwg.mxu0
      %v922 = vsel %vm515, %v871, 0
      %v925 = vsel %vm877, %v498, 0
      %927 = vmatprep.subr.bf16.mxu0 0
      %928 = vmatpush1.bf16.msra.mxu0 %v925
      %929 = vmatprep.subr.bf16.mxu0 0
      %930 = vmatpush1.bf16.msra.mxu0 0
      %931 = vmatprep.subr.bf16.mxu0 0
      %932 = vmatpush1.bf16.msra.mxu0 0
      %933 = vmatprep.subr.bf16.mxu0 0
      %934 = vmatpush1.bf16.msra.mxu0 0
      %935 = vmatprep.subr.bf16.mxu0 0
      %936 = vmatpush1.bf16.msra.mxu0 0
      %937 = vmatprep.subr.bf16.mxu0 0
      %938 = vmatpush1.bf16.msra.mxu0 0
      %939 = vmatprep.subr.bf16.mxu0 0
      %940 = vmatpush1.bf16.msra.mxu0 0
      %941 = vmatprep.subr.bf16.mxu0 0
      %942 = vmatpush1.bf16.msra.mxu0 0
      %943 = vmatprep.subr.bf16.mxu0 0
      %944 = vmatpush1.bf16.msra.mxu0 0
      %945 = vmatprep.subr.bf16.mxu0 0
      %946 = vmatpush1.bf16.msra.mxu0 0
      %947 = vmatprep.subr.bf16.mxu0 0
      %948 = vmatpush1.bf16.msra.mxu0 0
      %949 = vmatprep.subr.bf16.mxu0 0
      %950 = vmatpush1.bf16.msra.mxu0 0
      %951 = vmatprep.subr.bf16.mxu0 0
      %952 = vmatpush1.bf16.msra.mxu0 0
      %953 = vmatprep.subr.bf16.mxu0 0
      %954 = vmatpush1.bf16.msra.mxu0 0
      %955 = vmatprep.subr.bf16.mxu0 0
      %956 = vmatpush1.bf16.msra.mxu0 0
      %957 = vmatprep.subr.bf16.mxu0 0
      %958 = vmatpush1.bf16.msra.mxu0 0
      %959 = vmatprep.mubr.bf16.mxu0 0
      %960 = vmatmul.mubr.bf16.gmra.mrb[0].mxu0 %v922
      %v961 = vpop.f32.mrb[0].mxu0
      %v962 = vadd.f32 0.0, %v961
      %v963 = vpop.f32.mrb[0].mxu0
      %v964 = vpop.f32.mrb[0].mxu0
      %v965 = vpop.f32.mrb[0].mxu0
      %966 = vdwg.mxu0
      %v968 = vsel %vm515, %v872, 0
      %v971 = vsel %vm877, %v499, 0
      %973 = vmatprep.subr.bf16.mxu0 0
      %974 = vmatpush1.bf16.msra.mxu0 %v971
      %975 = vmatprep.subr.bf16.mxu0 0
      %976 = vmatpush1.bf16.msra.mxu0 0
      %977 = vmatprep.subr.bf16.mxu0 0
      %978 = vmatpush1.bf16.msra.mxu0 0
      %979 = vmatprep.subr.bf16.mxu0 0
      %980 = vmatpush1.bf16.msra.mxu0 0
      %981 = vmatprep.subr.bf16.mxu0 0
      %982 = vmatpush1.bf16.msra.mxu0 0
      %983 = vmatprep.subr.bf16.mxu0 0
      %984 = vmatpush1.bf16.msra.mxu0 0
      %985 = vmatprep.subr.bf16.mxu0 0
      %986 = vmatpush1.bf16.msra.mxu0 0
      %987 = vmatprep.subr.bf16.mxu0 0
      %988 = vmatpush1.bf16.msra.mxu0 0
      %989 = vmatprep.subr.bf16.mxu0 0
      %990 = vmatpush1.bf16.msra.mxu0 0
      %991 = vmatprep.subr.bf16.mxu0 0
      %992 = vmatpush1.bf16.msra.mxu0 0
      %993 = vmatprep.subr.bf16.mxu0 0
      %994 = vmatpush1.bf16.msra.mxu0 0
      %995 = vmatprep.subr.bf16.mxu0 0
      %996 = vmatpush1.bf16.msra.mxu0 0
      %997 = vmatprep.subr.bf16.mxu0 0
      %998 = vmatpush1.bf16.msra.mxu0 0
      %999 = vmatprep.subr.bf16.mxu0 0
      %1000 = vmatpush1.bf16.msra.mxu0 0
      %1001 = vmatprep.subr.bf16.mxu0 0
      %1002 = vmatpush1.bf16.msra.mxu0 0
      %1003 = vmatprep.subr.bf16.mxu0 0
      %1004 = vmatpush1.bf16.msra.mxu0 0
      %1005 = vmatprep.mubr.bf16.mxu0 0
      %1006 = vmatmul.mubr.bf16.gmra.mrb[0].mxu0 %v968
      %v1007 = vpop.f32.mrb[0].mxu0
      %v1008 = vadd.f32 0.0, %v1007
      %v1009 = vpop.f32.mrb[0].mxu0
      %v1010 = vpop.f32.mrb[0].mxu0
      %v1011 = vpop.f32.mrb[0].mxu0
      %1012 = vdwg.mxu0
      %v1014 = vsel %vm515, %v873, 0
      %v1017 = vsel %vm877, %v500, 0
      %1019 = vmatprep.subr.bf16.mxu0 0
      %1020 = vmatpush1.bf16.msra.mxu0 %v1017
      %1021 = vmatprep.subr.bf16.mxu0 0
      %1022 = vmatpush1.bf16.msra.mxu0 0
      %1023 = vmatprep.subr.bf16.mxu0 0
      %1024 = vmatpush1.bf16.msra.mxu0 0
      %1025 = vmatprep.subr.bf16.mxu0 0
      %1026 = vmatpush1.bf16.msra.mxu0 0
      %1027 = vmatprep.subr.bf16.mxu0 0
      %1028 = vmatpush1.bf16.msra.mxu0 0
      %1029 = vmatprep.subr.bf16.mxu0 0
      %1030 = vmatpush1.bf16.msra.mxu0 0
      %1031 = vmatprep.subr.bf16.mxu0 0
      %1032 = vmatpush1.bf16.msra.mxu0 0
      %1033 = vmatprep.subr.bf16.mxu0 0
      %1034 = vmatpush1.bf16.msra.mxu0 0
      %1035 = vmatprep.subr.bf16.mxu0 0
      %1036 = vmatpush1.bf16.msra.mxu0 0
      %1037 = vmatprep.subr.bf16.mxu0 0
      %1038 = vmatpush1.bf16.msra.mxu0 0
      %1039 = vmatprep.subr.bf16.mxu0 0
      %1040 = vmatpush1.bf16.msra.mxu0 0
      %1041 = vmatprep.subr.bf16.mxu0 0
      %1042 = vmatpush1.bf16.msra.mxu0 0
      %1043 = vmatprep.subr.bf16.mxu0 0
      %1044 = vmatpush1.bf16.msra.mxu0 0
      %1045 = vmatprep.subr.bf16.mxu0 0
      %1046 = vmatpush1.bf16.msra.mxu0 0
      %1047 = vmatprep.subr.bf16.mxu0 0
      %1048 = vmatpush1.bf16.msra.mxu0 0
      %1049 = vmatprep.subr.bf16.mxu0 0
      %1050 = vmatpush1.bf16.msra.mxu0 0
      %1051 = vmatprep.mubr.bf16.mxu0 0
      %1052 = vmatmul.mubr.bf16.gmra.mrb[0].mxu0 %v1014
      %v1053 = vpop.f32.mrb[0].mxu0
      %v1054 = vadd.f32 0.0, %v1053
      %v1055 = vpop.f32.mrb[0].mxu0
      %v1056 = vpop.f32.mrb[0].mxu0
      %v1057 = vpop.f32.mrb[0].mxu0
      %1058 = vdwg.mxu0
      %v1059 = vadd.f32 %v866, %v916
      %v1060 = vadd.f32 %v867, %v962
      %v1061 = vadd.f32 %v868, %v1008
      %v1062 = vadd.f32 %v869, %v1054
      %1063 = vst.msk [vmem:[#allocation4] sm:$0xff] %vm515, %v1059
      %1064 = vst.msk [vmem:[#allocation4 + $0x8] sm:$0xff] %vm515, %v1060
      %1065 = vst.msk [vmem:[#allocation4 + $0x10] sm:$0xff] %vm515, %v1061
      %1066 = vst.msk [vmem:[#allocation4 + $0x18] sm:$0xff] %vm515, %v1062
      %1067 = vst.msk [vmem:[#allocation2] sm:$0xff] %vm837, %v765
      %1068 = vst.msk [vmem:[#allocation2 + $0x8] sm:$0xff] %vm837, %v766
      %1069 = vst.msk [vmem:[#allocation2 + $0x10] sm:$0xff] %vm837, %v767
      %1070 = vst.msk [vmem:[#allocation2 + $0x18] sm:$0xff] %vm837, %v768
      // Predicated region
      $region52: #{ngram_mha_nar_forward.6} parent=39 // pred_check
        %p1071 = pneg %p471
      $region53: #{ngram_mha_nar_forward.6} parent=39 // pred_check_branch
        %1073 = sbr.rel (%p1071) target = $region55
      $region54: #{ngram_mha_nar_forward.6} parent=39 // pred_region
        %v1074 = vld [vmem:[#allocation3] sm:$0xff]
        %v1075 = vld [vmem:[#allocation3 + $0x8] sm:$0xff]
        %v1076 = vld [vmem:[#allocation3 + $0x10] sm:$0xff]
        %v1077 = vld [vmem:[#allocation3 + $0x18] sm:$0xff]
        %v1078 = vrcp.pop %v1074
        %v1079 = vrcp.pop %v1075
        %v1080 = vrcp.pop %v1076
        %v1081 = vrcp.pop %v1077
        %v1082 = vld [vmem:[#allocation4] sm:$0xff]
        %v1083 = vld [vmem:[#allocation4 + $0x8] sm:$0xff]
        %v1084 = vld [vmem:[#allocation4 + $0x10] sm:$0xff]
        %v1085 = vld [vmem:[#allocation4 + $0x18] sm:$0xff]
        %1087 = vset.pattern.permute.xlu0 0
        %1088 = vperm.xlu0 %1087, %v1078
        %v1089 = vpop.permute.xlu0 %1088
        %1092 = vset.pattern.permute.xlu0 0
        %1093 = vperm.xlu0 %1092, %v1079
        %v1094 = vpop.permute.xlu0 %1093
        %1097 = vset.pattern.permute.xlu0 0
        %1098 = vperm.xlu0 %1097, %v1080
        %v1099 = vpop.permute.xlu0 %1098
        %1102 = vset.pattern.permute.xlu0 0
        %1103 = vperm.xlu0 %1102, %v1081
        %v1104 = vpop.permute.xlu0 %1103
        %v1106 = vmul.f32 %v1082, %v1089
        %v1107 = vmul.f32 %v1083, %v1094
        %v1108 = vmul.f32 %v1084, %v1099
        %v1109 = vmul.f32 %v1085, %v1104
        %v1110 = vpack.c.bf16 %v1106, %v1106
        %v1111 = vpack.c.bf16 %v1107, %v1107
        %v1112 = vpack.c.bf16 %v1108, %v1108
        %v1113 = vpack.c.bf16 %v1109, %v1109
        %vm1114 = vcmask 60416
        %1115 = vst.msk [vmem:[%s468] sm:$0xf] %vm1114, %v1110
        %1116 = vst.msk [vmem:[%s468 + $0x4] sm:$0xf] %vm1114, %v1111
        %1117 = vst.msk [vmem:[%s468 + $0x8] sm:$0xf] %vm1114, %v1112
        %1118 = vst.msk [vmem:[%s468 + $0xc] sm:$0xf] %vm1114, %v1113
      $region55: #{ngram_mha_nar_forward.6} parent=39 // pred_fallthru
        _
      %s1119 = smul.u32 4, %s27
      %p1120 = scmp.lt.s32.totalorder %s26, 1
      %s1121 = scalar_select %p1120, %s26, 1
      %p1122 = scmp.lt.s32.totalorder %s1119, 3
      %s1123 = scalar_select %p1122, %s1119, 3
      %p1124 = scmp.lt.s32.totalorder %s28, 0
      %s1125 = scalar_select %p1124, %s28, 0
      %s1126 = sadd.s32 %s1125, %s1123
      %s1127 = smul.addr %s1121, 4
      %s1128 = sadd.s32 %s1126, %s1127
      %s1129 = smul.addr %s1128, 4
      %s1130 = scalar_lea.vmem %s7, %s1129
      // Predicated region
      $region56: #{ngram_mha_nar_forward.6} parent=39 // pred_check
        %p1131 = pneg %p216
      $region57: #{ngram_mha_nar_forward.6} parent=39 // pred_check_branch
        %1133 = sbr.rel (%p1131) target = $region59
      $region58: #{ngram_mha_nar_forward.6} parent=39 // pred_region
        %s1134 = smul.u32 4, %s27
      $region59: #{ngram_mha_nar_forward.6} parent=39 // pred_fallthru
        _
    $region40: #{ngram_mha_nar_forward.6} parent=5 // pred_fallthru
      _
    %p1135 = scmp.le.s32.totalorder 2, %s15
    // Predicated region
    $region60: #{ngram_mha_nar_forward.6} parent=5 // pred_check
      %p1136 = pneg %p1135
    $region61: #{ngram_mha_nar_forward.6} parent=5 // pred_check_branch
      %1138 = sbr.rel (%p1136) target = $region63
    $region62: #{ngram_mha_nar_forward.6} parent=5 // pred_region
      %s1139 = ssub.s32 %s15, 2
      // Predicated region
      $region64: #{ngram_mha_nar_forward.6} parent=62 // pred_check
        %p1140 = pneg %p222
      $region65: #{ngram_mha_nar_forward.6} parent=62 // pred_check_branch
        %1142 = sbr.rel (%p1140) target = $region67
      $region66: #{ngram_mha_nar_forward.6} parent=62 // pred_region
        %s1143 = smul.u32 4, %s31
        %p1144 = scmp.lt.s32.totalorder %s30, 1
        %s1145 = scalar_select %p1144, %s30, 1
        %p1146 = scmp.lt.s32.totalorder %s1143, 3
        %s1147 = scalar_select %p1146, %s1143, 3
        %p1148 = scmp.lt.s32.totalorder %s32, 0
        %s1149 = scalar_select %p1148, %s32, 0
        %s1150 = sadd.s32 %s1149, %s1147
        %s1151 = smul.addr %s1145, 4
        %s1152 = sadd.s32 %s1150, %s1151
        %s1153 = smul.addr %s1152, 4
        %s1154 = scalar_lea.vmem %s7, %s1153
      $region67: #{ngram_mha_nar_forward.6} parent=62 // pred_fallthru
        _
    $region63: #{ngram_mha_nar_forward.6} parent=5 // pred_fallthru
      _
  $region6: #{ngram_mha_nar_forward.6} parent=0 // loop_footer
    %s19 = sadd.s32 1, %s15
  $region7: #{ngram_mha_nar_forward.6} parent=0 // loop_footer_branch
    %14 = sbr.rel target = $region3
  $region8: #{ngram_mha_nar_forward.6} parent=0 // loop_exit
    _

</llo_original>
